<compile_context>
chip_gen: v6e
topology: v6e:2x2x1
jax: 0.10.0
libtpu: 0.0.40
codegen_flags: <defaults>
</compile_context>

<pallas_src>
import functools

import jax
import jax.numpy as jnp
from jax.experimental import pallas as pl
from jax.experimental.pallas import tpu as pltpu

DROPOUT_PROB = 0.5
HIDDEN_SIZE = 50
INPUT_SIZE = 32 * 32 * 3
OUTPUT_SIZE = 10


def _drop_net_train_kernel(x_ref, w1_ref, b1_ref, w2_ref, b2_ref, bits_ref,
                           o_ref, *, keep_threshold, keep_scale):
    # fc1: (TB, F) @ (F, H) + (1, H), f32 accumulation on the MXU.
    h = jnp.dot(x_ref[...], w1_ref[...], preferred_element_type=jnp.float32)
    h = h + b1_ref[...]
    # ReLU
    h = jnp.maximum(h, 0.0)
    # Dropout (training mode): keep w.p. (1-p), scale kept activations by 1/(1-p).
    # Integer compare on the raw uniform bits: P(bits >= p*2^32) == 1 - p.
    keep = bits_ref[...] >= jnp.uint32(keep_threshold)
    h = jnp.where(keep, h * jnp.float32(keep_scale), 0.0)
    # fc2: (TB, H) @ (H, O) + (1, O)
    o = jnp.dot(h.astype(w2_ref.dtype), w2_ref[...],
                preferred_element_type=jnp.float32)
    o_ref[...] = o + b2_ref[...]


def _drop_net_eval_kernel(x_ref, w1_ref, b1_ref, w2_ref, b2_ref, o_ref):
    h = jnp.dot(x_ref[...], w1_ref[...], preferred_element_type=jnp.float32)
    h = h + b1_ref[...]
    h = jnp.maximum(h, 0.0)
    o = jnp.dot(h.astype(w2_ref.dtype), w2_ref[...],
                preferred_element_type=jnp.float32)
    o_ref[...] = o + b2_ref[...]


def drop_net_forward(x, w1, b1, w2, b2, key=None, *,
                     dropout_prob=DROPOUT_PROB, training=True, tile_b=512):
    """x: (B, C, H, W) or (B, F).  Weights stored as (in, out).  Returns (B, O) f32.

    tile_b: batch tile.  512 keeps the double-buffered bf16 x tiles (~3 MiB each)
    well inside v7x's 64 MiB VMEM while already sitting near the HBM roofline on
    v5e/v6e; rows beyond a multiple of tile_b are zero-padded and sliced off.
    """
    B = x.shape[0]
    x2d = x.reshape(B, -1)
    F_in = x2d.shape[1]
    H = w1.shape[1]
    O = w2.shape[1]

    # Batch tiling: full-batch block if small, else tile_b-row tiles (mult. of 8).
    TB = B if B <= tile_b else tile_b
    pad = (-B) % TB
    B_pad = B + pad

    # bf16 matmul inputs; f32 accumulation happens inside the kernel.
    x_bf = x2d.astype(jnp.bfloat16)
    if pad:
        x_bf = jnp.pad(x_bf, ((0, pad), (0, 0)))
    w1_bf = w1.astype(jnp.bfloat16)
    w2_bf = w2.astype(jnp.bfloat16)
    b1_2d = b1.reshape(1, H).astype(jnp.float32)
    b2_2d = b2.reshape(1, O).astype(jnp.float32)

    grid = (B_pad // TB,)
    x_spec = pl.BlockSpec((TB, F_in), lambda i: (i, 0))
    w1_spec = pl.BlockSpec((F_in, H), lambda i: (0, 0))   # resident across steps
    b1_spec = pl.BlockSpec((1, H), lambda i: (0, 0))
    w2_spec = pl.BlockSpec((H, O), lambda i: (0, 0))
    b2_spec = pl.BlockSpec((1, O), lambda i: (0, 0))
    out_spec = pl.BlockSpec((TB, O), lambda i: (i, 0))

    apply_dropout = training and dropout_prob > 0.0
    if apply_dropout:
        if key is None:
            key = jax.random.PRNGKey(0)
        # Independent bits per (row, hidden unit) -> no mask repetition across tiles.
        bits = jax.random.bits(key, shape=(B_pad, H), dtype=jnp.uint32)
        keep_threshold = min(int(round(dropout_prob * 2.0 ** 32)), 2 ** 32 - 1)
        keep_scale = 1.0 / (1.0 - dropout_prob)
        kernel = functools.partial(_drop_net_train_kernel,
                                   keep_threshold=keep_threshold,
                                   keep_scale=keep_scale)
        in_specs = [x_spec, w1_spec, b1_spec, w2_spec, b2_spec,
                    pl.BlockSpec((TB, H), lambda i: (i, 0))]
        inputs = (x_bf, w1_bf, b1_2d, w2_bf, b2_2d, bits)
    else:
        kernel = _drop_net_eval_kernel
        in_specs = [x_spec, w1_spec, b1_spec, w2_spec, b2_spec]
        inputs = (x_bf, w1_bf, b1_2d, w2_bf, b2_2d)

    bytes_accessed = (sum(int(a.size) * a.dtype.itemsize for a in inputs)
                      + B_pad * O * 4)
    cost = pl.CostEstimate(flops=2 * B_pad * (F_in * H + H * O),
                           transcendentals=0,
                           bytes_accessed=bytes_accessed)

    out = pl.pallas_call(
        kernel,
        out_shape=jax.ShapeDtypeStruct((B_pad, O), jnp.float32),
        grid_spec=pltpu.PrefetchScalarGridSpec(
            num_scalar_prefetch=0,
            grid=grid,
            in_specs=in_specs,
            out_specs=out_spec),
        compiler_params=pltpu.CompilerParams(
            dimension_semantics=("parallel",)),
        cost_estimate=cost,
    )(*inputs)
    return out[:B]


def init_params(key):
    """Mirror the PyTorch module init: kaiming_normal_ weights, default bias init.

    Weights are stored transposed as (in, out) so the kernel computes x @ W + b.
    """
    k1, k2, k3, k4 = jax.random.split(key, 4)
    std1 = (2.0 / INPUT_SIZE) ** 0.5
    std2 = (2.0 / HIDDEN_SIZE) ** 0.5
    w1 = std1 * jax.random.normal(k1, (INPUT_SIZE, HIDDEN_SIZE), jnp.float32)
    w2 = std2 * jax.random.normal(k2, (HIDDEN_SIZE, OUTPUT_SIZE), jnp.float32)
    bound1 = 1.0 / (INPUT_SIZE ** 0.5)
    bound2 = 1.0 / (HIDDEN_SIZE ** 0.5)
    b1 = jax.random.uniform(k3, (HIDDEN_SIZE,), jnp.float32, -bound1, bound1)
    b2 = jax.random.uniform(k4, (OUTPUT_SIZE,), jnp.float32, -bound2, bound2)
    return w1, b1, w2, b2


if __name__ == "__main__":
    key = jax.random.PRNGKey(0)
    kx, kp, kd = jax.random.split(key, 3)
    # Small batch, CIFAR-like image shape (B, C, H, W) = (2, 3, 32, 32)
    x = jax.random.normal(kx, (2, 3, 32, 32), jnp.float32)
    w1, b1, w2, b2 = init_params(kp)

    out = drop_net_forward(x, w1, b1, w2, b2, key=kd, training=True)
    out = jax.block_until_ready(out)
    assert out.shape == (2, OUTPUT_SIZE), out.shape
    assert bool(jnp.all(jnp.isfinite(out)))

    # Eval-mode path (no dropout) also exercised once.
    out_eval = jax.block_until_ready(
        drop_net_forward(x, w1, b1, w2, b2, training=False))
    assert out_eval.shape == (2, OUTPUT_SIZE)
    print("KERNEL_OK")
</pallas_src>

<mosaic_0001>
module attributes {stable_mosaic.version = 11 : i64} {
  func.func @_drop_net_train_kernel(%arg0: i32, %arg1: memref<2x3072xbf16, #tpu.memory_space<vmem>>, %arg2: memref<3072x50xbf16, #tpu.memory_space<vmem>>, %arg3: memref<1x50xf32, #tpu.memory_space<vmem>>, %arg4: memref<50x10xbf16, #tpu.memory_space<vmem>>, %arg5: memref<1x10xf32, #tpu.memory_space<vmem>>, %arg6: memref<2x50xi32, #tpu.memory_space<vmem>>, %arg7: memref<2x10xf32, #tpu.memory_space<vmem>>) attributes {dimension_semantics = [#tpu.dimension_semantics<parallel>], iteration_bounds = array<i64: 1>, scalar_prefetch = 0 : i64, scratch_operands = 0 : i64, tpu.core_type = #tpu.core_type<tc>, window_params = [{transform_indices = @transform_0, window_bounds = array<i64: 2, 3072>}, {pipeline_mode = #tpu.pipeline_mode<synchronous>, transform_indices = @transform_1, window_bounds = array<i64: 3072, 50>}, {pipeline_mode = #tpu.pipeline_mode<synchronous>, transform_indices = @transform_2, window_bounds = array<i64: 1, 50>}, {pipeline_mode = #tpu.pipeline_mode<synchronous>, transform_indices = @transform_3, window_bounds = array<i64: 50, 10>}, {pipeline_mode = #tpu.pipeline_mode<synchronous>, transform_indices = @transform_4, window_bounds = array<i64: 1, 10>}, {transform_indices = @transform_5, window_bounds = array<i64: 2, 50>}, {transform_indices = @transform_6, window_bounds = array<i64: 2, 10>}]} {
    %c0 = arith.constant 0 : index
    %c0_0 = arith.constant 0 : index
    %0 = vector.load %arg1[%c0, %c0_0] : memref<2x3072xbf16, #tpu.memory_space<vmem>>, vector<2x3072xbf16>
    %c0_1 = arith.constant 0 : index
    %c0_2 = arith.constant 0 : index
    %1 = vector.load %arg2[%c0_1, %c0_2] : memref<3072x50xbf16, #tpu.memory_space<vmem>>, vector<3072x50xbf16>
    %cst = arith.constant dense<0.000000e+00> : vector<2x50xf32>
    %2 = tpu.matmul %0, %1, %cst {dimension_numbers = #tpu.dot_dimension_numbers<[1], [0], [0], [1], [0, 0, 1, 1], [], []>} : vector<2x3072xbf16>, vector<3072x50xbf16>, vector<2x50xf32> -> vector<2x50xf32>
    %c0_3 = arith.constant 0 : index
    %c0_4 = arith.constant 0 : index
    %3 = vector.load %arg3[%c0_3, %c0_4] : memref<1x50xf32, #tpu.memory_space<vmem>>, vector<1x50xf32>
    %4 = vector.broadcast %3 : vector<1x50xf32> to vector<2x50xf32>
    %5 = arith.addf %2, %4 : vector<2x50xf32>
    %cst_5 = arith.constant 0.000000e+00 : f32
    %6 = vector.broadcast %cst_5 : f32 to vector<2x50xf32>
    %7 = arith.maximumf %5, %6 : vector<2x50xf32>
    %c0_6 = arith.constant 0 : index
    %c0_7 = arith.constant 0 : index
    %8 = vector.load %arg6[%c0_6, %c0_7] : memref<2x50xi32, #tpu.memory_space<vmem>>, vector<2x50xi32>
    %c-2147483648_i32 = arith.constant -2147483648 : i32
    %9 = vector.broadcast %c-2147483648_i32 : i32 to vector<2x50xi32>
    %10 = arith.cmpi uge, %8, %9 : vector<2x50xi32>
    %cst_8 = arith.constant 2.000000e+00 : f32
    %11 = vector.broadcast %cst_8 : f32 to vector<2x50xf32>
    %12 = arith.mulf %7, %11 : vector<2x50xf32>
    %cst_9 = arith.constant 0.000000e+00 : f32
    %13 = vector.broadcast %cst_9 : f32 to vector<2x50xf32>
    %14 = arith.select %10, %12, %13 : vector<2x50xi1>, vector<2x50xf32>
    %15 = arith.truncf %14 : vector<2x50xf32> to vector<2x50xbf16>
    %c0_10 = arith.constant 0 : index
    %c0_11 = arith.constant 0 : index
    %16 = vector.load %arg4[%c0_10, %c0_11] : memref<50x10xbf16, #tpu.memory_space<vmem>>, vector<50x10xbf16>
    %cst_12 = arith.constant dense<0.000000e+00> : vector<2x10xf32>
    %17 = tpu.matmul %15, %16, %cst_12 {dimension_numbers = #tpu.dot_dimension_numbers<[1], [0], [0], [1], [0, 0, 1, 1], [], []>} : vector<2x50xbf16>, vector<50x10xbf16>, vector<2x10xf32> -> vector<2x10xf32>
    %c0_13 = arith.constant 0 : index
    %c0_14 = arith.constant 0 : index
    %18 = vector.load %arg5[%c0_13, %c0_14] : memref<1x10xf32, #tpu.memory_space<vmem>>, vector<1x10xf32>
    %19 = vector.broadcast %18 : vector<1x10xf32> to vector<2x10xf32>
    %20 = arith.addf %17, %19 : vector<2x10xf32>
    %c0_15 = arith.constant 0 : index
    %c0_16 = arith.constant 0 : index
    %21 = vector.load %arg7[%c0_15, %c0_16] : memref<2x10xf32, #tpu.memory_space<vmem>>, vector<2x10xf32>
    tpu.vector_store %arg7[%c0_15, %c0_16], %20 {strides = array<i32>} : memref<2x10xf32, #tpu.memory_space<vmem>>, vector<2x10xf32>,
    return
  }
  func.func @transform_0(%arg0: i32) -> (i32, i32) {
    %c0_i32 = arith.constant 0 : i32
    %c0_i32_0 = arith.constant 0 : i32
    return %arg0, %c0_i32 : i32, i32
  }
  func.func @transform_1(%arg0: i32) -> (i32, i32) {
    %c0_i32 = arith.constant 0 : i32
    %c0_i32_0 = arith.constant 0 : i32
    %c0_i32_1 = arith.constant 0 : i32
    return %c0_i32, %c0_i32_0 : i32, i32
  }
  func.func @transform_2(%arg0: i32) -> (i32, i32) {
    %c0_i32 = arith.constant 0 : i32
    %c0_i32_0 = arith.constant 0 : i32
    %c0_i32_1 = arith.constant 0 : i32
    return %c0_i32, %c0_i32_0 : i32, i32
  }
  func.func @transform_3(%arg0: i32) -> (i32, i32) {
    %c0_i32 = arith.constant 0 : i32
    %c0_i32_0 = arith.constant 0 : i32
    %c0_i32_1 = arith.constant 0 : i32
    return %c0_i32, %c0_i32_0 : i32, i32
  }
  func.func @transform_4(%arg0: i32) -> (i32, i32) {
    %c0_i32 = arith.constant 0 : i32
    %c0_i32_0 = arith.constant 0 : i32
    %c0_i32_1 = arith.constant 0 : i32
    return %c0_i32, %c0_i32_0 : i32, i32
  }
  func.func @transform_5(%arg0: i32) -> (i32, i32) {
    %c0_i32 = arith.constant 0 : i32
    %c0_i32_0 = arith.constant 0 : i32
    return %arg0, %c0_i32 : i32, i32
  }
  func.func @transform_6(%arg0: i32) -> (i32, i32) {
    %c0_i32 = arith.constant 0 : i32
    %c0_i32_0 = arith.constant 0 : i32
    return %arg0, %c0_i32 : i32, i32
  }
}

</mosaic_0001>

<llo_original>
// kernel: tpu_custom_call.1
$region0: #{tpu_custom_call.1}
  #allocation0 [shape = 'u32[]', space=smem, size = 0x4, offset = 0x4, fixed_abs, tag = 'smem constant byte address 0x4 - core index']
  #allocation1 [shape = 'u32[144,128]{1,0:T(1,128)}', space=vmem, size = 0x12000, scoped, tag = 'internal scratch']
  %s0 = inlined_call_operand.vmem [shape: bf16[2,3072], index: 0, kind: input, shape index: {}]
  %s1 = inlined_call_operand.vmem [shape: bf16[3072,50], index: 1, kind: input, shape index: {}]
  %s2 = inlined_call_operand.vmem [shape: f32[1,50], index: 2, kind: input, shape index: {}]
  %s3 = inlined_call_operand.vmem [shape: bf16[50,10], index: 3, kind: input, shape index: {}]
  %s4 = inlined_call_operand.vmem [shape: f32[1,10], index: 4, kind: input, shape index: {}]
  %s5 = inlined_call_operand.vmem [shape: u32[2,50], index: 5, kind: input, shape index: {}]
  %s6 = inlined_call_operand.hbm [shape: f32[2,10], index: 6, kind: output, shape index: {}]
  %s7 = sld [smem:[#allocation0]]
  $region34: #{tpu_custom_call.1} parent=0
    _
  %s9 = ssub.s32 1, %s7
  %s10 = scalar_select 0, %s9, %s7
  $region1: #{tpu_custom_call.1} parent=0
    #allocation2 [shape = 'u8[1024]{0}', space=vmem, size = 0x400, scoped, tag = 'output window, operand 0, single buffered']
    #allocation3 [shape = 's32[1]{0}', space=sflag, size = 0x4, scoped, tag = 'scoped memory for tpu_custom_call.1']
    %11 = vsyncpa [#allocation3], 0
    // Predicated region
    $region2: #{tpu_custom_call.1} parent=1 // pred_check
      _
    $region3: #{tpu_custom_call.1} parent=1 // pred_check_branch
      %13 = sbr.rel (0) target = $region5
    $region4: #{tpu_custom_call.1} parent=1 // pred_region
      _
    $region5: #{tpu_custom_call.1} parent=1 // pred_fallthru
      _
    // Predicated region
    $region6: #{tpu_custom_call.1} parent=1 // pred_check
      _
    $region7: #{tpu_custom_call.1} parent=1 // pred_check_branch
      %15 = sbr.rel (0) target = $region9
    $region8: #{tpu_custom_call.1} parent=1 // pred_region
      _
    $region9: #{tpu_custom_call.1} parent=1 // pred_fallthru
      _
    // Predicated region
    $region10: #{tpu_custom_call.1} parent=1 // pred_check
      _
    $region11: #{tpu_custom_call.1} parent=1 // pred_check_branch
      %17 = sbr.rel (0) target = $region13
    $region12: #{tpu_custom_call.1} parent=1 // pred_region
      _
    $region13: #{tpu_custom_call.1} parent=1 // pred_fallthru
      _
    // Predicated region
    $region14: #{tpu_custom_call.1} parent=1 // pred_check
      _
    $region15: #{tpu_custom_call.1} parent=1 // pred_check_branch
      %19 = sbr.rel (0) target = $region17
    $region16: #{tpu_custom_call.1} parent=1 // pred_region
      _
    $region17: #{tpu_custom_call.1} parent=1 // pred_fallthru
      _
    // Predicated region
    $region18: #{tpu_custom_call.1} parent=1 // pred_check
      _
    $region19: #{tpu_custom_call.1} parent=1 // pred_check_branch
      %21 = sbr.rel (0) target = $region21
    $region20: #{tpu_custom_call.1} parent=1 // pred_region
      _
    $region21: #{tpu_custom_call.1} parent=1 // pred_fallthru
      _
    // Predicated region
    $region22: #{tpu_custom_call.1} parent=1 // pred_check
      _
    $region23: #{tpu_custom_call.1} parent=1 // pred_check_branch
      %23 = sbr.rel (0) target = $region25
    $region24: #{tpu_custom_call.1} parent=1 // pred_region
      _
    $region25: #{tpu_custom_call.1} parent=1 // pred_fallthru
      _
    %v25 = vld [vmem:[%s0] sm:$0xff]
    %v26 = vld [vmem:[%s0 + $0x8] sm:$0xff]
    %v27 = vld [vmem:[%s0 + $0x10] sm:$0xff]
    %v28 = vld [vmem:[%s1] sm:$0xf]
    %v29 = vld [vmem:[%s1 + $0x4] sm:$0xf]
    %v30 = vld [vmem:[%s1 + $0x8] sm:$0xf]
    %v31 = vld [vmem:[%s1 + $0xc] sm:$0xf]
    %v32 = vld [vmem:[%s1 + $0x10] sm:$0xf]
    %v33 = vld [vmem:[%s1 + $0x14] sm:$0xf]
    %v34 = vld [vmem:[%s1 + $0x18] sm:$0xf]
    %v35 = vld [vmem:[%s1 + $0x1c] sm:$0xf]
    %v36 = vld [vmem:[%s1 + $0x20] sm:$0xf]
    %v37 = vld [vmem:[%s1 + $0x24] sm:$0xf]
    %v38 = vld [vmem:[%s1 + $0x28] sm:$0xf]
    %v39 = vld [vmem:[%s1 + $0x2c] sm:$0xf]
    %v40 = vld [vmem:[%s1 + $0x30] sm:$0xf]
    %v41 = vld [vmem:[%s1 + $0x34] sm:$0xf]
    %v42 = vld [vmem:[%s1 + $0x38] sm:$0xf]
    %v43 = vld [vmem:[%s1 + $0x3c] sm:$0xf]
    %v44 = vld [vmem:[%s1 + $0x40] sm:$0xf]
    %v45 = vld [vmem:[%s1 + $0x44] sm:$0xf]
    %v46 = vld [vmem:[%s1 + $0x48] sm:$0xf]
    %v47 = vld [vmem:[%s1 + $0x4c] sm:$0xf]
    %v48 = vld [vmem:[%s1 + $0x50] sm:$0xf]
    %v49 = vld [vmem:[%s1 + $0x54] sm:$0xf]
    %v50 = vld [vmem:[%s1 + $0x58] sm:$0xf]
    %v51 = vld [vmem:[%s1 + $0x5c] sm:$0xf]
    %v52 = vld [vmem:[%s1 + $0x60] sm:$0xf]
    %v53 = vld [vmem:[%s1 + $0x64] sm:$0xf]
    %v54 = vld [vmem:[%s1 + $0x68] sm:$0xf]
    %v55 = vld [vmem:[%s1 + $0x6c] sm:$0xf]
    %v56 = vld [vmem:[%s1 + $0x70] sm:$0xf]
    %v57 = vld [vmem:[%s1 + $0x74] sm:$0xf]
    %v58 = vld [vmem:[%s1 + $0x78] sm:$0xf]
    %v59 = vld [vmem:[%s1 + $0x7c] sm:$0xf]
    %v60 = vld [vmem:[%s1 + $0x80] sm:$0xf]
    %v61 = vld [vmem:[%s1 + $0x84] sm:$0xf]
    %v62 = vld [vmem:[%s1 + $0x88] sm:$0xf]
    %v63 = vld [vmem:[%s1 + $0x8c] sm:$0xf]
    %v64 = vld [vmem:[%s1 + $0x90] sm:$0xf]
    %v65 = vld [vmem:[%s1 + $0x94] sm:$0xf]
    %v66 = vld [vmem:[%s1 + $0x98] sm:$0xf]
    %v67 = vld [vmem:[%s1 + $0x9c] sm:$0xf]
    %v68 = vld [vmem:[%s1 + $0xa0] sm:$0xf]
    %v69 = vld [vmem:[%s1 + $0xa4] sm:$0xf]
    %v70 = vld [vmem:[%s1 + $0xa8] sm:$0xf]
    %v71 = vld [vmem:[%s1 + $0xac] sm:$0xf]
    %v72 = vld [vmem:[%s1 + $0xb0] sm:$0xf]
    %v73 = vld [vmem:[%s1 + $0xb4] sm:$0xf]
    %v74 = vld [vmem:[%s1 + $0xb8] sm:$0xf]
    %v75 = vld [vmem:[%s1 + $0xbc] sm:$0xf]
    %v76 = vld [vmem:[%s1 + $0xc0] sm:$0xf]
    %v77 = vld [vmem:[%s1 + $0xc4] sm:$0xf]
    %v78 = vld [vmem:[%s1 + $0xc8] sm:$0xf]
    %v79 = vld [vmem:[%s1 + $0xcc] sm:$0xf]
    %v80 = vld [vmem:[%s1 + $0xd0] sm:$0xf]
    %v81 = vld [vmem:[%s1 + $0xd4] sm:$0xf]
    %v82 = vld [vmem:[%s1 + $0xd8] sm:$0xf]
    %v83 = vld [vmem:[%s1 + $0xdc] sm:$0xf]
    %v84 = vld [vmem:[%s1 + $0xe0] sm:$0xf]
    %v85 = vld [vmem:[%s1 + $0xe4] sm:$0xf]
    %v86 = vld [vmem:[%s1 + $0xe8] sm:$0xf]
    %v87 = vld [vmem:[%s1 + $0xec] sm:$0xf]
    %v88 = vld [vmem:[%s1 + $0xf0] sm:$0xf]
    %v89 = vld [vmem:[%s1 + $0xf4] sm:$0xf]
    %v90 = vld [vmem:[%s1 + $0xf8] sm:$0xf]
    %v91 = vld [vmem:[%s1 + $0xfc] sm:$0xf]
    %v92 = vld [vmem:[%s1 + $0x100] sm:$0xf]
    %v93 = vld [vmem:[%s1 + $0x104] sm:$0xf]
    %v94 = vld [vmem:[%s1 + $0x108] sm:$0xf]
    %v95 = vld [vmem:[%s1 + $0x10c] sm:$0xf]
    %v96 = vld [vmem:[%s1 + $0x110] sm:$0xf]
    %v97 = vld [vmem:[%s1 + $0x114] sm:$0xf]
    %v98 = vld [vmem:[%s1 + $0x118] sm:$0xf]
    %v99 = vld [vmem:[%s1 + $0x11c] sm:$0xf]
    %v100 = vld [vmem:[%s1 + $0x120] sm:$0xf]
    %v101 = vld [vmem:[%s1 + $0x124] sm:$0xf]
    %v102 = vld [vmem:[%s1 + $0x128] sm:$0xf]
    %v103 = vld [vmem:[%s1 + $0x12c] sm:$0xf]
    %v104 = vld [vmem:[%s1 + $0x130] sm:$0xf]
    %v105 = vld [vmem:[%s1 + $0x134] sm:$0xf]
    %v106 = vld [vmem:[%s1 + $0x138] sm:$0xf]
    %v107 = vld [vmem:[%s1 + $0x13c] sm:$0xf]
    %v108 = vld [vmem:[%s1 + $0x140] sm:$0xf]
    %v109 = vld [vmem:[%s1 + $0x144] sm:$0xf]
    %v110 = vld [vmem:[%s1 + $0x148] sm:$0xf]
    %v111 = vld [vmem:[%s1 + $0x14c] sm:$0xf]
    %v112 = vld [vmem:[%s1 + $0x150] sm:$0xf]
    %v113 = vld [vmem:[%s1 + $0x154] sm:$0xf]
    %v114 = vld [vmem:[%s1 + $0x158] sm:$0xf]
    %v115 = vld [vmem:[%s1 + $0x15c] sm:$0xf]
    %v116 = vld [vmem:[%s1 + $0x160] sm:$0xf]
    %v117 = vld [vmem:[%s1 + $0x164] sm:$0xf]
    %v118 = vld [vmem:[%s1 + $0x168] sm:$0xf]
    %v119 = vld [vmem:[%s1 + $0x16c] sm:$0xf]
    %v120 = vld [vmem:[%s1 + $0x170] sm:$0xf]
    %v121 = vld [vmem:[%s1 + $0x174] sm:$0xf]
    %v122 = vld [vmem:[%s1 + $0x178] sm:$0xf]
    %v123 = vld [vmem:[%s1 + $0x17c] sm:$0xf]
    %v124 = vld [vmem:[%s1 + $0x180] sm:$0xf]
    %v125 = vld [vmem:[%s1 + $0x184] sm:$0xf]
    %v126 = vld [vmem:[%s1 + $0x188] sm:$0xf]
    %v127 = vld [vmem:[%s1 + $0x18c] sm:$0xf]
    %v128 = vld [vmem:[%s1 + $0x190] sm:$0xf]
    %v129 = vld [vmem:[%s1 + $0x194] sm:$0xf]
    %v130 = vld [vmem:[%s1 + $0x198] sm:$0xf]
    %v131 = vld [vmem:[%s1 + $0x19c] sm:$0xf]
    %v132 = vld [vmem:[%s1 + $0x1a0] sm:$0xf]
    %v133 = vld [vmem:[%s1 + $0x1a4] sm:$0xf]
    %v134 = vld [vmem:[%s1 + $0x1a8] sm:$0xf]
    %v135 = vld [vmem:[%s1 + $0x1ac] sm:$0xf]
    %v136 = vld [vmem:[%s1 + $0x1b0] sm:$0xf]
    %v137 = vld [vmem:[%s1 + $0x1b4] sm:$0xf]
    %v138 = vld [vmem:[%s1 + $0x1b8] sm:$0xf]
    %v139 = vld [vmem:[%s1 + $0x1bc] sm:$0xf]
    %v140 = vld [vmem:[%s1 + $0x1c0] sm:$0xf]
    %v141 = vld [vmem:[%s1 + $0x1c4] sm:$0xf]
    %v142 = vld [vmem:[%s1 + $0x1c8] sm:$0xf]
    %v143 = vld [vmem:[%s1 + $0x1cc] sm:$0xf]
    %v144 = vld [vmem:[%s1 + $0x1d0] sm:$0xf]
    %v145 = vld [vmem:[%s1 + $0x1d4] sm:$0xf]
    %v146 = vld [vmem:[%s1 + $0x1d8] sm:$0xf]
    %v147 = vld [vmem:[%s1 + $0x1dc] sm:$0xf]
    %v148 = vld [vmem:[%s1 + $0x1e0] sm:$0xf]
    %v149 = vld [vmem:[%s1 + $0x1e4] sm:$0xf]
    %v150 = vld [vmem:[%s1 + $0x1e8] sm:$0xf]
    %v151 = vld [vmem:[%s1 + $0x1ec] sm:$0xf]
    %v152 = vld [vmem:[%s1 + $0x1f0] sm:$0xf]
    %v153 = vld [vmem:[%s1 + $0x1f4] sm:$0xf]
    %v154 = vld [vmem:[%s1 + $0x1f8] sm:$0xf]
    %v155 = vld [vmem:[%s1 + $0x1fc] sm:$0xf]
    %v156 = vld [vmem:[%s1 + $0x200] sm:$0xf]
    %v157 = vld [vmem:[%s1 + $0x204] sm:$0xf]
    %v158 = vld [vmem:[%s1 + $0x208] sm:$0xf]
    %v159 = vld [vmem:[%s1 + $0x20c] sm:$0xf]
    %v160 = vld [vmem:[%s1 + $0x210] sm:$0xf]
    %v161 = vld [vmem:[%s1 + $0x214] sm:$0xf]
    %v162 = vld [vmem:[%s1 + $0x218] sm:$0xf]
    %v163 = vld [vmem:[%s1 + $0x21c] sm:$0xf]
    %v164 = vld [vmem:[%s1 + $0x220] sm:$0xf]
    %v165 = vld [vmem:[%s1 + $0x224] sm:$0xf]
    %v166 = vld [vmem:[%s1 + $0x228] sm:$0xf]
    %v167 = vld [vmem:[%s1 + $0x22c] sm:$0xf]
    %v168 = vld [vmem:[%s1 + $0x230] sm:$0xf]
    %v169 = vld [vmem:[%s1 + $0x234] sm:$0xf]
    %v170 = vld [vmem:[%s1 + $0x238] sm:$0xf]
    %v171 = vld [vmem:[%s1 + $0x23c] sm:$0xf]
    %v172 = vld [vmem:[%s1 + $0x240] sm:$0xf]
    %v173 = vld [vmem:[%s1 + $0x244] sm:$0xf]
    %v174 = vld [vmem:[%s1 + $0x248] sm:$0xf]
    %v175 = vld [vmem:[%s1 + $0x24c] sm:$0xf]
    %v176 = vld [vmem:[%s1 + $0x250] sm:$0xf]
    %v177 = vld [vmem:[%s1 + $0x254] sm:$0xf]
    %v178 = vld [vmem:[%s1 + $0x258] sm:$0xf]
    %v179 = vld [vmem:[%s1 + $0x25c] sm:$0xf]
    %v180 = vld [vmem:[%s1 + $0x260] sm:$0xf]
    %v181 = vld [vmem:[%s1 + $0x264] sm:$0xf]
    %v182 = vld [vmem:[%s1 + $0x268] sm:$0xf]
    %v183 = vld [vmem:[%s1 + $0x26c] sm:$0xf]
    %v184 = vld [vmem:[%s1 + $0x270] sm:$0xf]
    %v185 = vld [vmem:[%s1 + $0x274] sm:$0xf]
    %v186 = vld [vmem:[%s1 + $0x278] sm:$0xf]
    %v187 = vld [vmem:[%s1 + $0x27c] sm:$0xf]
    %v188 = vld [vmem:[%s1 + $0x280] sm:$0xf]
    %v189 = vld [vmem:[%s1 + $0x284] sm:$0xf]
    %v190 = vld [vmem:[%s1 + $0x288] sm:$0xf]
    %v191 = vld [vmem:[%s1 + $0x28c] sm:$0xf]
    %v192 = vld [vmem:[%s1 + $0x290] sm:$0xf]
    %v193 = vld [vmem:[%s1 + $0x294] sm:$0xf]
    %v194 = vld [vmem:[%s1 + $0x298] sm:$0xf]
    %v195 = vld [vmem:[%s1 + $0x29c] sm:$0xf]
    %v196 = vld [vmem:[%s1 + $0x2a0] sm:$0xf]
    %v197 = vld [vmem:[%s1 + $0x2a4] sm:$0xf]
    %v198 = vld [vmem:[%s1 + $0x2a8] sm:$0xf]
    %v199 = vld [vmem:[%s1 + $0x2ac] sm:$0xf]
    %v200 = vld [vmem:[%s1 + $0x2b0] sm:$0xf]
    %v201 = vld [vmem:[%s1 + $0x2b4] sm:$0xf]
    %v202 = vld [vmem:[%s1 + $0x2b8] sm:$0xf]
    %v203 = vld [vmem:[%s1 + $0x2bc] sm:$0xf]
    %v204 = vld [vmem:[%s1 + $0x2c0] sm:$0xf]
    %v205 = vld [vmem:[%s1 + $0x2c4] sm:$0xf]
    %v206 = vld [vmem:[%s1 + $0x2c8] sm:$0xf]
    %v207 = vld [vmem:[%s1 + $0x2cc] sm:$0xf]
    %v208 = vld [vmem:[%s1 + $0x2d0] sm:$0xf]
    %v209 = vld [vmem:[%s1 + $0x2d4] sm:$0xf]
    %v210 = vld [vmem:[%s1 + $0x2d8] sm:$0xf]
    %v211 = vld [vmem:[%s1 + $0x2dc] sm:$0xf]
    %v212 = vld [vmem:[%s1 + $0x2e0] sm:$0xf]
    %v213 = vld [vmem:[%s1 + $0x2e4] sm:$0xf]
    %v214 = vld [vmem:[%s1 + $0x2e8] sm:$0xf]
    %v215 = vld [vmem:[%s1 + $0x2ec] sm:$0xf]
    %v216 = vld [vmem:[%s1 + $0x2f0] sm:$0xf]
    %v217 = vld [vmem:[%s1 + $0x2f4] sm:$0xf]
    %v218 = vld [vmem:[%s1 + $0x2f8] sm:$0xf]
    %v219 = vld [vmem:[%s1 + $0x2fc] sm:$0xf]
    %v220 = vld [vmem:[%s1 + $0x300] sm:$0xf]
    %v221 = vld [vmem:[%s1 + $0x304] sm:$0xf]
    %v222 = vld [vmem:[%s1 + $0x308] sm:$0xf]
    %v223 = vld [vmem:[%s1 + $0x30c] sm:$0xf]
    %v224 = vld [vmem:[%s1 + $0x310] sm:$0xf]
    %v225 = vld [vmem:[%s1 + $0x314] sm:$0xf]
    %v226 = vld [vmem:[%s1 + $0x318] sm:$0xf]
    %v227 = vld [vmem:[%s1 + $0x31c] sm:$0xf]
    %v228 = vld [vmem:[%s1 + $0x320] sm:$0xf]
    %v229 = vld [vmem:[%s1 + $0x324] sm:$0xf]
    %v230 = vld [vmem:[%s1 + $0x328] sm:$0xf]
    %v231 = vld [vmem:[%s1 + $0x32c] sm:$0xf]
    %v232 = vld [vmem:[%s1 + $0x330] sm:$0xf]
    %v233 = vld [vmem:[%s1 + $0x334] sm:$0xf]
    %v234 = vld [vmem:[%s1 + $0x338] sm:$0xf]
    %v235 = vld [vmem:[%s1 + $0x33c] sm:$0xf]
    %v236 = vld [vmem:[%s1 + $0x340] sm:$0xf]
    %v237 = vld [vmem:[%s1 + $0x344] sm:$0xf]
    %v238 = vld [vmem:[%s1 + $0x348] sm:$0xf]
    %v239 = vld [vmem:[%s1 + $0x34c] sm:$0xf]
    %v240 = vld [vmem:[%s1 + $0x350] sm:$0xf]
    %v241 = vld [vmem:[%s1 + $0x354] sm:$0xf]
    %v242 = vld [vmem:[%s1 + $0x358] sm:$0xf]
    %v243 = vld [vmem:[%s1 + $0x35c] sm:$0xf]
    %v244 = vld [vmem:[%s1 + $0x360] sm:$0xf]
    %v245 = vld [vmem:[%s1 + $0x364] sm:$0xf]
    %v246 = vld [vmem:[%s1 + $0x368] sm:$0xf]
    %v247 = vld [vmem:[%s1 + $0x36c] sm:$0xf]
    %v248 = vld [vmem:[%s1 + $0x370] sm:$0xf]
    %v249 = vld [vmem:[%s1 + $0x374] sm:$0xf]
    %v250 = vld [vmem:[%s1 + $0x378] sm:$0xf]
    %v251 = vld [vmem:[%s1 + $0x37c] sm:$0xf]
    %v252 = vld [vmem:[%s1 + $0x380] sm:$0xf]
    %v253 = vld [vmem:[%s1 + $0x384] sm:$0xf]
    %v254 = vld [vmem:[%s1 + $0x388] sm:$0xf]
    %v255 = vld [vmem:[%s1 + $0x38c] sm:$0xf]
    %v256 = vld [vmem:[%s1 + $0x390] sm:$0xf]
    %v257 = vld [vmem:[%s1 + $0x394] sm:$0xf]
    %v258 = vld [vmem:[%s1 + $0x398] sm:$0xf]
    %v259 = vld [vmem:[%s1 + $0x39c] sm:$0xf]
    %v260 = vld [vmem:[%s1 + $0x3a0] sm:$0xf]
    %v261 = vld [vmem:[%s1 + $0x3a4] sm:$0xf]
    %v262 = vld [vmem:[%s1 + $0x3a8] sm:$0xf]
    %v263 = vld [vmem:[%s1 + $0x3ac] sm:$0xf]
    %v264 = vld [vmem:[%s1 + $0x3b0] sm:$0xf]
    %v265 = vld [vmem:[%s1 + $0x3b4] sm:$0xf]
    %v266 = vld [vmem:[%s1 + $0x3b8] sm:$0xf]
    %v267 = vld [vmem:[%s1 + $0x3bc] sm:$0xf]
    %v268 = vld [vmem:[%s1 + $0x3c0] sm:$0xf]
    %v269 = vld [vmem:[%s1 + $0x3c4] sm:$0xf]
    %v270 = vld [vmem:[%s1 + $0x3c8] sm:$0xf]
    %v271 = vld [vmem:[%s1 + $0x3cc] sm:$0xf]
    %v272 = vld [vmem:[%s1 + $0x3d0] sm:$0xf]
    %v273 = vld [vmem:[%s1 + $0x3d4] sm:$0xf]
    %v274 = vld [vmem:[%s1 + $0x3d8] sm:$0xf]
    %v275 = vld [vmem:[%s1 + $0x3dc] sm:$0xf]
    %v276 = vld [vmem:[%s1 + $0x3e0] sm:$0xf]
    %v277 = vld [vmem:[%s1 + $0x3e4] sm:$0xf]
    %v278 = vld [vmem:[%s1 + $0x3e8] sm:$0xf]
    %v279 = vld [vmem:[%s1 + $0x3ec] sm:$0xf]
    %v280 = vld [vmem:[%s1 + $0x3f0] sm:$0xf]
    %v281 = vld [vmem:[%s1 + $0x3f4] sm:$0xf]
    %v282 = vld [vmem:[%s1 + $0x3f8] sm:$0xf]
    %v283 = vld [vmem:[%s1 + $0x3fc] sm:$0xf]
    %v284 = vld [vmem:[%s1 + $0x400] sm:$0xf]
    %v285 = vld [vmem:[%s1 + $0x404] sm:$0xf]
    %v286 = vld [vmem:[%s1 + $0x408] sm:$0xf]
    %v287 = vld [vmem:[%s1 + $0x40c] sm:$0xf]
    %v288 = vld [vmem:[%s1 + $0x410] sm:$0xf]
    %v289 = vld [vmem:[%s1 + $0x414] sm:$0xf]
    %v290 = vld [vmem:[%s1 + $0x418] sm:$0xf]
    %v291 = vld [vmem:[%s1 + $0x41c] sm:$0xf]
    %v292 = vld [vmem:[%s1 + $0x420] sm:$0xf]
    %v293 = vld [vmem:[%s1 + $0x424] sm:$0xf]
    %v294 = vld [vmem:[%s1 + $0x428] sm:$0xf]
    %v295 = vld [vmem:[%s1 + $0x42c] sm:$0xf]
    %v296 = vld [vmem:[%s1 + $0x430] sm:$0xf]
    %v297 = vld [vmem:[%s1 + $0x434] sm:$0xf]
    %v298 = vld [vmem:[%s1 + $0x438] sm:$0xf]
    %v299 = vld [vmem:[%s1 + $0x43c] sm:$0xf]
    %v300 = vld [vmem:[%s1 + $0x440] sm:$0xf]
    %v301 = vld [vmem:[%s1 + $0x444] sm:$0xf]
    %v302 = vld [vmem:[%s1 + $0x448] sm:$0xf]
    %v303 = vld [vmem:[%s1 + $0x44c] sm:$0xf]
    %v304 = vld [vmem:[%s1 + $0x450] sm:$0xf]
    %v305 = vld [vmem:[%s1 + $0x454] sm:$0xf]
    %v306 = vld [vmem:[%s1 + $0x458] sm:$0xf]
    %v307 = vld [vmem:[%s1 + $0x45c] sm:$0xf]
    %v308 = vld [vmem:[%s1 + $0x460] sm:$0xf]
    %v309 = vld [vmem:[%s1 + $0x464] sm:$0xf]
    %v310 = vld [vmem:[%s1 + $0x468] sm:$0xf]
    %v311 = vld [vmem:[%s1 + $0x46c] sm:$0xf]
    %v312 = vld [vmem:[%s1 + $0x470] sm:$0xf]
    %v313 = vld [vmem:[%s1 + $0x474] sm:$0xf]
    %v314 = vld [vmem:[%s1 + $0x478] sm:$0xf]
    %v315 = vld [vmem:[%s1 + $0x47c] sm:$0xf]
    %v316 = vld [vmem:[%s1 + $0x480] sm:$0xf]
    %v317 = vld [vmem:[%s1 + $0x484] sm:$0xf]
    %v318 = vld [vmem:[%s1 + $0x488] sm:$0xf]
    %v319 = vld [vmem:[%s1 + $0x48c] sm:$0xf]
    %v320 = vld [vmem:[%s1 + $0x490] sm:$0xf]
    %v321 = vld [vmem:[%s1 + $0x494] sm:$0xf]
    %v322 = vld [vmem:[%s1 + $0x498] sm:$0xf]
    %v323 = vld [vmem:[%s1 + $0x49c] sm:$0xf]
    %v324 = vld [vmem:[%s1 + $0x4a0] sm:$0xf]
    %v325 = vld [vmem:[%s1 + $0x4a4] sm:$0xf]
    %v326 = vld [vmem:[%s1 + $0x4a8] sm:$0xf]
    %v327 = vld [vmem:[%s1 + $0x4ac] sm:$0xf]
    %v328 = vld [vmem:[%s1 + $0x4b0] sm:$0xf]
    %v329 = vld [vmem:[%s1 + $0x4b4] sm:$0xf]
    %v330 = vld [vmem:[%s1 + $0x4b8] sm:$0xf]
    %v331 = vld [vmem:[%s1 + $0x4bc] sm:$0xf]
    %v332 = vld [vmem:[%s1 + $0x4c0] sm:$0xf]
    %v333 = vld [vmem:[%s1 + $0x4c4] sm:$0xf]
    %v334 = vld [vmem:[%s1 + $0x4c8] sm:$0xf]
    %v335 = vld [vmem:[%s1 + $0x4cc] sm:$0xf]
    %v336 = vld [vmem:[%s1 + $0x4d0] sm:$0xf]
    %v337 = vld [vmem:[%s1 + $0x4d4] sm:$0xf]
    %v338 = vld [vmem:[%s1 + $0x4d8] sm:$0xf]
    %v339 = vld [vmem:[%s1 + $0x4dc] sm:$0xf]
    %v340 = vld [vmem:[%s1 + $0x4e0] sm:$0xf]
    %v341 = vld [vmem:[%s1 + $0x4e4] sm:$0xf]
    %v342 = vld [vmem:[%s1 + $0x4e8] sm:$0xf]
    %v343 = vld [vmem:[%s1 + $0x4ec] sm:$0xf]
    %v344 = vld [vmem:[%s1 + $0x4f0] sm:$0xf]
    %v345 = vld [vmem:[%s1 + $0x4f4] sm:$0xf]
    %v346 = vld [vmem:[%s1 + $0x4f8] sm:$0xf]
    %v347 = vld [vmem:[%s1 + $0x4fc] sm:$0xf]
    %v348 = vld [vmem:[%s1 + $0x500] sm:$0xf]
    %v349 = vld [vmem:[%s1 + $0x504] sm:$0xf]
    %v350 = vld [vmem:[%s1 + $0x508] sm:$0xf]
    %v351 = vld [vmem:[%s1 + $0x50c] sm:$0xf]
    %v352 = vld [vmem:[%s1 + $0x510] sm:$0xf]
    %v353 = vld [vmem:[%s1 + $0x514] sm:$0xf]
    %v354 = vld [vmem:[%s1 + $0x518] sm:$0xf]
    %v355 = vld [vmem:[%s1 + $0x51c] sm:$0xf]
    %v356 = vld [vmem:[%s1 + $0x520] sm:$0xf]
    %v357 = vld [vmem:[%s1 + $0x524] sm:$0xf]
    %v358 = vld [vmem:[%s1 + $0x528] sm:$0xf]
    %v359 = vld [vmem:[%s1 + $0x52c] sm:$0xf]
    %v360 = vld [vmem:[%s1 + $0x530] sm:$0xf]
    %v361 = vld [vmem:[%s1 + $0x534] sm:$0xf]
    %v362 = vld [vmem:[%s1 + $0x538] sm:$0xf]
    %v363 = vld [vmem:[%s1 + $0x53c] sm:$0xf]
    %v364 = vld [vmem:[%s1 + $0x540] sm:$0xf]
    %v365 = vld [vmem:[%s1 + $0x544] sm:$0xf]
    %v366 = vld [vmem:[%s1 + $0x548] sm:$0xf]
    %v367 = vld [vmem:[%s1 + $0x54c] sm:$0xf]
    %v368 = vld [vmem:[%s1 + $0x550] sm:$0xf]
    %v369 = vld [vmem:[%s1 + $0x554] sm:$0xf]
    %v370 = vld [vmem:[%s1 + $0x558] sm:$0xf]
    %v371 = vld [vmem:[%s1 + $0x55c] sm:$0xf]
    %v372 = vld [vmem:[%s1 + $0x560] sm:$0xf]
    %v373 = vld [vmem:[%s1 + $0x564] sm:$0xf]
    %v374 = vld [vmem:[%s1 + $0x568] sm:$0xf]
    %v375 = vld [vmem:[%s1 + $0x56c] sm:$0xf]
    %v376 = vld [vmem:[%s1 + $0x570] sm:$0xf]
    %v377 = vld [vmem:[%s1 + $0x574] sm:$0xf]
    %v378 = vld [vmem:[%s1 + $0x578] sm:$0xf]
    %v379 = vld [vmem:[%s1 + $0x57c] sm:$0xf]
    %v380 = vld [vmem:[%s1 + $0x580] sm:$0xf]
    %v381 = vld [vmem:[%s1 + $0x584] sm:$0xf]
    %v382 = vld [vmem:[%s1 + $0x588] sm:$0xf]
    %v383 = vld [vmem:[%s1 + $0x58c] sm:$0xf]
    %v384 = vld [vmem:[%s1 + $0x590] sm:$0xf]
    %v385 = vld [vmem:[%s1 + $0x594] sm:$0xf]
    %v386 = vld [vmem:[%s1 + $0x598] sm:$0xf]
    %v387 = vld [vmem:[%s1 + $0x59c] sm:$0xf]
    %v388 = vld [vmem:[%s1 + $0x5a0] sm:$0xf]
    %v389 = vld [vmem:[%s1 + $0x5a4] sm:$0xf]
    %v390 = vld [vmem:[%s1 + $0x5a8] sm:$0xf]
    %v391 = vld [vmem:[%s1 + $0x5ac] sm:$0xf]
    %v392 = vld [vmem:[%s1 + $0x5b0] sm:$0xf]
    %v393 = vld [vmem:[%s1 + $0x5b4] sm:$0xf]
    %v394 = vld [vmem:[%s1 + $0x5b8] sm:$0xf]
    %v395 = vld [vmem:[%s1 + $0x5bc] sm:$0xf]
    %v396 = vld [vmem:[%s1 + $0x5c0] sm:$0xf]
    %v397 = vld [vmem:[%s1 + $0x5c4] sm:$0xf]
    %v398 = vld [vmem:[%s1 + $0x5c8] sm:$0xf]
    %v399 = vld [vmem:[%s1 + $0x5cc] sm:$0xf]
    %v400 = vld [vmem:[%s1 + $0x5d0] sm:$0xf]
    %v401 = vld [vmem:[%s1 + $0x5d4] sm:$0xf]
    %v402 = vld [vmem:[%s1 + $0x5d8] sm:$0xf]
    %v403 = vld [vmem:[%s1 + $0x5dc] sm:$0xf]
    %v404 = vld [vmem:[%s1 + $0x5e0] sm:$0xf]
    %v405 = vld [vmem:[%s1 + $0x5e4] sm:$0xf]
    %v406 = vld [vmem:[%s1 + $0x5e8] sm:$0xf]
    %v407 = vld [vmem:[%s1 + $0x5ec] sm:$0xf]
    %v408 = vld [vmem:[%s1 + $0x5f0] sm:$0xf]
    %v409 = vld [vmem:[%s1 + $0x5f4] sm:$0xf]
    %v410 = vld [vmem:[%s1 + $0x5f8] sm:$0xf]
    %v411 = vld [vmem:[%s1 + $0x5fc] sm:$0xf]
    %v412 = vld [vmem:[%s2] sm:$0x1]
    %v414 = vlaneseq
    %v415 = vshrl.u32 %v414, 7
    %v416 = vsub.s32 0, %v415
    %v417 = vrot.slane %v412, %v416
    %v422 = vcombine.high %v25, %v25
    %v424 = vunpack.c.l.s4 1966171168
    %v425 = vunpack.c.0.s8 %v424
    %v426 = vlaneseq
    %v427 = vshrl.u32 %v426, 7
    %v428 = vsub.s32 %v425, %v427
    %v429 = vrot.slane %v25, %v428
    %v431 = vunpack.c.l.s4 1966171168
    %v432 = vunpack.c.0.s8 %v431
    %v433 = vlaneseq
    %v434 = vshrl.u32 %v433, 7
    %v435 = vsub.s32 %v432, %v434
    %v436 = vrot.slane %v422, %v435
    %v437 = vcombine.high %v429, %v429
    %v438 = vcombine.high %v436, %v436
    %v440 = vunpack.c.l.s4 1966171168
    %v441 = vunpack.c.0.s8 %v440
    %v442 = vlaneseq
    %v443 = vshrl.u32 %v442, 7
    %v444 = vsub.s32 %v441, %v443
    %v445 = vrot.slane %v429, %v444
    %v447 = vunpack.c.l.s4 1966171168
    %v448 = vunpack.c.0.s8 %v447
    %v449 = vlaneseq
    %v450 = vshrl.u32 %v449, 7
    %v451 = vsub.s32 %v448, %v450
    %v452 = vrot.slane %v436, %v451
    %v454 = vunpack.c.l.s4 1966171168
    %v455 = vunpack.c.0.s8 %v454
    %v456 = vlaneseq
    %v457 = vshrl.u32 %v456, 7
    %v458 = vsub.s32 %v455, %v457
    %v459 = vrot.slane %v437, %v458
    %v461 = vunpack.c.l.s4 1966171168
    %v462 = vunpack.c.0.s8 %v461
    %v463 = vlaneseq
    %v464 = vshrl.u32 %v463, 7
    %v465 = vsub.s32 %v462, %v464
    %v466 = vrot.slane %v438, %v465
    %v467 = vcombine.high %v445, %v445
    %v468 = vcombine.high %v452, %v452
    %v469 = vcombine.high %v459, %v459
    %v470 = vcombine.high %v466, %v466
    %v471 = vcombine.high %v26, %v26
    %v473 = vunpack.c.l.s4 1966171168
    %v474 = vunpack.c.0.s8 %v473
    %v475 = vlaneseq
    %v476 = vshrl.u32 %v475, 7
    %v477 = vsub.s32 %v474, %v476
    %v478 = vrot.slane %v26, %v477
    %v480 = vunpack.c.l.s4 1966171168
    %v481 = vunpack.c.0.s8 %v480
    %v482 = vlaneseq
    %v483 = vshrl.u32 %v482, 7
    %v484 = vsub.s32 %v481, %v483
    %v485 = vrot.slane %v471, %v484
    %v486 = vcombine.high %v478, %v478
    %v487 = vcombine.high %v485, %v485
    %v489 = vunpack.c.l.s4 1966171168
    %v490 = vunpack.c.0.s8 %v489
    %v491 = vlaneseq
    %v492 = vshrl.u32 %v491, 7
    %v493 = vsub.s32 %v490, %v492
    %v494 = vrot.slane %v478, %v493
    %v496 = vunpack.c.l.s4 1966171168
    %v497 = vunpack.c.0.s8 %v496
    %v498 = vlaneseq
    %v499 = vshrl.u32 %v498, 7
    %v500 = vsub.s32 %v497, %v499
    %v501 = vrot.slane %v485, %v500
    %v503 = vunpack.c.l.s4 1966171168
    %v504 = vunpack.c.0.s8 %v503
    %v505 = vlaneseq
    %v506 = vshrl.u32 %v505, 7
    %v507 = vsub.s32 %v504, %v506
    %v508 = vrot.slane %v486, %v507
    %v510 = vunpack.c.l.s4 1966171168
    %v511 = vunpack.c.0.s8 %v510
    %v512 = vlaneseq
    %v513 = vshrl.u32 %v512, 7
    %v514 = vsub.s32 %v511, %v513
    %v515 = vrot.slane %v487, %v514
    %v516 = vcombine.high %v494, %v494
    %v517 = vcombine.high %v501, %v501
    %v518 = vcombine.high %v508, %v508
    %v519 = vcombine.high %v515, %v515
    %v520 = vcombine.high %v27, %v27
    %v522 = vunpack.c.l.s4 1966171168
    %v523 = vunpack.c.0.s8 %v522
    %v524 = vlaneseq
    %v525 = vshrl.u32 %v524, 7
    %v526 = vsub.s32 %v523, %v525
    %v527 = vrot.slane %v27, %v526
    %v529 = vunpack.c.l.s4 1966171168
    %v530 = vunpack.c.0.s8 %v529
    %v531 = vlaneseq
    %v532 = vshrl.u32 %v531, 7
    %v533 = vsub.s32 %v530, %v532
    %v534 = vrot.slane %v520, %v533
    %v535 = vcombine.high %v527, %v527
    %v536 = vcombine.high %v534, %v534
    %v538 = vunpack.c.l.s4 1966171168
    %v539 = vunpack.c.0.s8 %v538
    %v540 = vlaneseq
    %v541 = vshrl.u32 %v540, 7
    %v542 = vsub.s32 %v539, %v541
    %v543 = vrot.slane %v527, %v542
    %v545 = vunpack.c.l.s4 1966171168
    %v546 = vunpack.c.0.s8 %v545
    %v547 = vlaneseq
    %v548 = vshrl.u32 %v547, 7
    %v549 = vsub.s32 %v546, %v548
    %v550 = vrot.slane %v534, %v549
    %v552 = vunpack.c.l.s4 1966171168
    %v553 = vunpack.c.0.s8 %v552
    %v554 = vlaneseq
    %v555 = vshrl.u32 %v554, 7
    %v556 = vsub.s32 %v553, %v555
    %v557 = vrot.slane %v535, %v556
    %v559 = vunpack.c.l.s4 1966171168
    %v560 = vunpack.c.0.s8 %v559
    %v561 = vlaneseq
    %v562 = vshrl.u32 %v561, 7
    %v563 = vsub.s32 %v560, %v562
    %v564 = vrot.slane %v536, %v563
    %v565 = vcombine.high %v543, %v543
    %v566 = vcombine.high %v550, %v550
    %v567 = vcombine.high %v557, %v557
    %v568 = vcombine.high %v564, %v564
    %v977 = vunpack.c.l.b16 %v28
    %v978 = vunpack.c.l.b16 %v29
    %v979 = vunpack.c.l.b16 %v30
    %v980 = vunpack.c.l.b16 %v31
    %v981 = vunpack.c.l.b16 %v32
    %v982 = vunpack.c.l.b16 %v33
    %v983 = vunpack.c.l.b16 %v34
    %v984 = vunpack.c.l.b16 %v35
    %v985 = vunpack.c.l.b16 %v36
    %v986 = vunpack.c.l.b16 %v37
    %v987 = vunpack.c.l.b16 %v38
    %v988 = vunpack.c.l.b16 %v39
    %v989 = vunpack.c.l.b16 %v40
    %v990 = vunpack.c.l.b16 %v41
    %v991 = vunpack.c.l.b16 %v42
    %v992 = vunpack.c.l.b16 %v43
    %v993 = vunpack.c.l.b16 %v44
    %v994 = vunpack.c.l.b16 %v45
    %v995 = vunpack.c.l.b16 %v46
    %v996 = vunpack.c.l.b16 %v47
    %v997 = vunpack.c.l.b16 %v48
    %v998 = vunpack.c.l.b16 %v49
    %v999 = vunpack.c.l.b16 %v50
    %v1000 = vunpack.c.l.b16 %v51
    %v1001 = vunpack.c.l.b16 %v52
    %v1002 = vunpack.c.l.b16 %v53
    %v1003 = vunpack.c.l.b16 %v54
    %v1004 = vunpack.c.l.b16 %v55
    %v1005 = vunpack.c.l.b16 %v56
    %v1006 = vunpack.c.l.b16 %v57
    %v1007 = vunpack.c.l.b16 %v58
    %v1008 = vunpack.c.l.b16 %v59
    %v1009 = vunpack.c.l.b16 %v60
    %v1010 = vunpack.c.l.b16 %v61
    %v1011 = vunpack.c.l.b16 %v62
    %v1012 = vunpack.c.l.b16 %v63
    %v1013 = vunpack.c.l.b16 %v64
    %v1014 = vunpack.c.l.b16 %v65
    %v1015 = vunpack.c.l.b16 %v66
    %v1016 = vunpack.c.l.b16 %v67
    %v1017 = vunpack.c.l.b16 %v68
    %v1018 = vunpack.c.l.b16 %v69
    %v1019 = vunpack.c.l.b16 %v70
    %v1020 = vunpack.c.l.b16 %v71
    %v1021 = vunpack.c.l.b16 %v72
    %v1022 = vunpack.c.l.b16 %v73
    %v1023 = vunpack.c.l.b16 %v74
    %v1024 = vunpack.c.l.b16 %v75
    %v1025 = vunpack.c.l.b16 %v76
    %v1026 = vunpack.c.l.b16 %v77
    %v1027 = vunpack.c.l.b16 %v78
    %v1028 = vunpack.c.l.b16 %v79
    %v1029 = vunpack.c.l.b16 %v80
    %v1030 = vunpack.c.l.b16 %v81
    %v1031 = vunpack.c.l.b16 %v82
    %v1032 = vunpack.c.l.b16 %v83
    %v1033 = vunpack.c.l.b16 %v84
    %v1034 = vunpack.c.l.b16 %v85
    %v1035 = vunpack.c.l.b16 %v86
    %v1036 = vunpack.c.l.b16 %v87
    %v1037 = vunpack.c.l.b16 %v88
    %v1038 = vunpack.c.l.b16 %v89
    %v1039 = vunpack.c.l.b16 %v90
    %v1040 = vunpack.c.l.b16 %v91
    %v1041 = vunpack.c.l.b16 %v92
    %v1042 = vunpack.c.l.b16 %v93
    %v1043 = vunpack.c.l.b16 %v94
    %v1044 = vunpack.c.l.b16 %v95
    %v1045 = vunpack.c.l.b16 %v96
    %v1046 = vunpack.c.l.b16 %v97
    %v1047 = vunpack.c.l.b16 %v98
    %v1048 = vunpack.c.l.b16 %v99
    %v1049 = vunpack.c.l.b16 %v100
    %v1050 = vunpack.c.l.b16 %v101
    %v1051 = vunpack.c.l.b16 %v102
    %v1052 = vunpack.c.l.b16 %v103
    %v1053 = vunpack.c.l.b16 %v104
    %v1054 = vunpack.c.l.b16 %v105
    %v1055 = vunpack.c.l.b16 %v106
    %v1056 = vunpack.c.l.b16 %v107
    %v1057 = vunpack.c.l.b16 %v108
    %v1058 = vunpack.c.l.b16 %v109
    %v1059 = vunpack.c.l.b16 %v110
    %v1060 = vunpack.c.l.b16 %v111
    %v1061 = vunpack.c.l.b16 %v112
    %v1062 = vunpack.c.l.b16 %v113
    %v1063 = vunpack.c.l.b16 %v114
    %v1064 = vunpack.c.l.b16 %v115
    %v1065 = vunpack.c.l.b16 %v116
    %v1066 = vunpack.c.l.b16 %v117
    %v1067 = vunpack.c.l.b16 %v118
    %v1068 = vunpack.c.l.b16 %v119
    %v1069 = vunpack.c.l.b16 %v120
    %v1070 = vunpack.c.l.b16 %v121
    %v1071 = vunpack.c.l.b16 %v122
    %v1072 = vunpack.c.l.b16 %v123
    %v1073 = vunpack.c.l.b16 %v124
    %v1074 = vunpack.c.l.b16 %v125
    %v1075 = vunpack.c.l.b16 %v126
    %v1076 = vunpack.c.l.b16 %v127
    %v1077 = vunpack.c.l.b16 %v128
    %v1078 = vunpack.c.l.b16 %v129
    %v1079 = vunpack.c.l.b16 %v130
    %v1080 = vunpack.c.l.b16 %v131
    %v1081 = vunpack.c.l.b16 %v132
    %v1082 = vunpack.c.l.b16 %v133
    %v1083 = vunpack.c.l.b16 %v134
    %v1084 = vunpack.c.l.b16 %v135
    %v1085 = vunpack.c.l.b16 %v136
    %v1086 = vunpack.c.l.b16 %v137
    %v1087 = vunpack.c.l.b16 %v138
    %v1088 = vunpack.c.l.b16 %v139
    %v1089 = vunpack.c.l.b16 %v140
    %v1090 = vunpack.c.l.b16 %v141
    %v1091 = vunpack.c.l.b16 %v142
    %v1092 = vunpack.c.l.b16 %v143
    %v1093 = vunpack.c.l.b16 %v144
    %v1094 = vunpack.c.l.b16 %v145
    %v1095 = vunpack.c.l.b16 %v146
    %v1096 = vunpack.c.l.b16 %v147
    %v1097 = vunpack.c.l.b16 %v148
    %v1098 = vunpack.c.l.b16 %v149
    %v1099 = vunpack.c.l.b16 %v150
    %v1100 = vunpack.c.l.b16 %v151
    %v1101 = vunpack.c.l.b16 %v152
    %v1102 = vunpack.c.l.b16 %v153
    %v1103 = vunpack.c.l.b16 %v154
    %v1104 = vunpack.c.l.b16 %v155
    %v1105 = vunpack.c.l.b16 %v156
    %v1106 = vunpack.c.l.b16 %v157
    %v1107 = vunpack.c.l.b16 %v158
    %v1108 = vunpack.c.l.b16 %v159
    %v1109 = vunpack.c.l.b16 %v160
    %v1110 = vunpack.c.l.b16 %v161
    %v1111 = vunpack.c.l.b16 %v162
    %v1112 = vunpack.c.l.b16 %v163
    %v1113 = vunpack.c.l.b16 %v164
    %v1114 = vunpack.c.l.b16 %v165
    %v1115 = vunpack.c.l.b16 %v166
    %v1116 = vunpack.c.l.b16 %v167
    %v1117 = vunpack.c.l.b16 %v168
    %v1118 = vunpack.c.l.b16 %v169
    %v1119 = vunpack.c.l.b16 %v170
    %v1120 = vunpack.c.l.b16 %v171
    %v1121 = vunpack.c.l.b16 %v172
    %v1122 = vunpack.c.l.b16 %v173
    %v1123 = vunpack.c.l.b16 %v174
    %v1124 = vunpack.c.l.b16 %v175
    %v1125 = vunpack.c.l.b16 %v176
    %v1126 = vunpack.c.l.b16 %v177
    %v1127 = vunpack.c.l.b16 %v178
    %v1128 = vunpack.c.l.b16 %v179
    %v1129 = vunpack.c.l.b16 %v180
    %v1130 = vunpack.c.l.b16 %v181
    %v1131 = vunpack.c.l.b16 %v182
    %v1132 = vunpack.c.l.b16 %v183
    %v1133 = vunpack.c.l.b16 %v184
    %v1134 = vunpack.c.l.b16 %v185
    %v1135 = vunpack.c.l.b16 %v186
    %v1136 = vunpack.c.l.b16 %v187
    %v1137 = vunpack.c.l.b16 %v188
    %v1138 = vunpack.c.l.b16 %v189
    %v1139 = vunpack.c.l.b16 %v190
    %v1140 = vunpack.c.l.b16 %v191
    %v1141 = vunpack.c.l.b16 %v192
    %v1142 = vunpack.c.l.b16 %v193
    %v1143 = vunpack.c.l.b16 %v194
    %v1144 = vunpack.c.l.b16 %v195
    %v1145 = vunpack.c.l.b16 %v196
    %v1146 = vunpack.c.l.b16 %v197
    %v1147 = vunpack.c.l.b16 %v198
    %v1148 = vunpack.c.l.b16 %v199
    %v1149 = vunpack.c.l.b16 %v200
    %v1150 = vunpack.c.l.b16 %v201
    %v1151 = vunpack.c.l.b16 %v202
    %v1152 = vunpack.c.l.b16 %v203
    %v1153 = vunpack.c.l.b16 %v204
    %v1154 = vunpack.c.l.b16 %v205
    %v1155 = vunpack.c.l.b16 %v206
    %v1156 = vunpack.c.l.b16 %v207
    %v1157 = vunpack.c.l.b16 %v208
    %v1158 = vunpack.c.l.b16 %v209
    %v1159 = vunpack.c.l.b16 %v210
    %v1160 = vunpack.c.l.b16 %v211
    %v1161 = vunpack.c.l.b16 %v212
    %v1162 = vunpack.c.l.b16 %v213
    %v1163 = vunpack.c.l.b16 %v214
    %v1164 = vunpack.c.l.b16 %v215
    %v1165 = vunpack.c.l.b16 %v216
    %v1166 = vunpack.c.l.b16 %v217
    %v1167 = vunpack.c.l.b16 %v218
    %v1168 = vunpack.c.l.b16 %v219
    %v1169 = vunpack.c.l.b16 %v220
    %v1170 = vunpack.c.l.b16 %v221
    %v1171 = vunpack.c.l.b16 %v222
    %v1172 = vunpack.c.l.b16 %v223
    %v1173 = vunpack.c.l.b16 %v224
    %v1174 = vunpack.c.l.b16 %v225
    %v1175 = vunpack.c.l.b16 %v226
    %v1176 = vunpack.c.l.b16 %v227
    %v1177 = vunpack.c.l.b16 %v228
    %v1178 = vunpack.c.l.b16 %v229
    %v1179 = vunpack.c.l.b16 %v230
    %v1180 = vunpack.c.l.b16 %v231
    %v1181 = vunpack.c.l.b16 %v232
    %v1182 = vunpack.c.l.b16 %v233
    %v1183 = vunpack.c.l.b16 %v234
    %v1184 = vunpack.c.l.b16 %v235
    %v1185 = vunpack.c.l.b16 %v236
    %v1186 = vunpack.c.l.b16 %v237
    %v1187 = vunpack.c.l.b16 %v238
    %v1188 = vunpack.c.l.b16 %v239
    %v1189 = vunpack.c.l.b16 %v240
    %v1190 = vunpack.c.l.b16 %v241
    %v1191 = vunpack.c.l.b16 %v242
    %v1192 = vunpack.c.l.b16 %v243
    %v1193 = vunpack.c.l.b16 %v244
    %v1194 = vunpack.c.l.b16 %v245
    %v1195 = vunpack.c.l.b16 %v246
    %v1196 = vunpack.c.l.b16 %v247
    %v1197 = vunpack.c.l.b16 %v248
    %v1198 = vunpack.c.l.b16 %v249
    %v1199 = vunpack.c.l.b16 %v250
    %v1200 = vunpack.c.l.b16 %v251
    %v1201 = vunpack.c.l.b16 %v252
    %v1202 = vunpack.c.l.b16 %v253
    %v1203 = vunpack.c.l.b16 %v254
    %v1204 = vunpack.c.l.b16 %v255
    %v1205 = vunpack.c.l.b16 %v256
    %v1206 = vunpack.c.l.b16 %v257
    %v1207 = vunpack.c.l.b16 %v258
    %v1208 = vunpack.c.l.b16 %v259
    %v1209 = vunpack.c.l.b16 %v260
    %v1210 = vunpack.c.l.b16 %v261
    %v1211 = vunpack.c.l.b16 %v262
    %v1212 = vunpack.c.l.b16 %v263
    %v1213 = vunpack.c.l.b16 %v264
    %v1214 = vunpack.c.l.b16 %v265
    %v1215 = vunpack.c.l.b16 %v266
    %v1216 = vunpack.c.l.b16 %v267
    %v1217 = vunpack.c.l.b16 %v268
    %v1218 = vunpack.c.l.b16 %v269
    %v1219 = vunpack.c.l.b16 %v270
    %v1220 = vunpack.c.l.b16 %v271
    %v1221 = vunpack.c.l.b16 %v272
    %v1222 = vunpack.c.l.b16 %v273
    %v1223 = vunpack.c.l.b16 %v274
    %v1224 = vunpack.c.l.b16 %v275
    %v1225 = vunpack.c.l.b16 %v276
    %v1226 = vunpack.c.l.b16 %v277
    %v1227 = vunpack.c.l.b16 %v278
    %v1228 = vunpack.c.l.b16 %v279
    %v1229 = vunpack.c.l.b16 %v280
    %v1230 = vunpack.c.l.b16 %v281
    %v1231 = vunpack.c.l.b16 %v282
    %v1232 = vunpack.c.l.b16 %v283
    %v1233 = vunpack.c.l.b16 %v284
    %v1234 = vunpack.c.l.b16 %v285
    %v1235 = vunpack.c.l.b16 %v286
    %v1236 = vunpack.c.l.b16 %v287
    %v1237 = vunpack.c.l.b16 %v288
    %v1238 = vunpack.c.l.b16 %v289
    %v1239 = vunpack.c.l.b16 %v290
    %v1240 = vunpack.c.l.b16 %v291
    %v1241 = vunpack.c.l.b16 %v292
    %v1242 = vunpack.c.l.b16 %v293
    %v1243 = vunpack.c.l.b16 %v294
    %v1244 = vunpack.c.l.b16 %v295
    %v1245 = vunpack.c.l.b16 %v296
    %v1246 = vunpack.c.l.b16 %v297
    %v1247 = vunpack.c.l.b16 %v298
    %v1248 = vunpack.c.l.b16 %v299
    %v1249 = vunpack.c.l.b16 %v300
    %v1250 = vunpack.c.l.b16 %v301
    %v1251 = vunpack.c.l.b16 %v302
    %v1252 = vunpack.c.l.b16 %v303
    %v1253 = vunpack.c.l.b16 %v304
    %v1254 = vunpack.c.l.b16 %v305
    %v1255 = vunpack.c.l.b16 %v306
    %v1256 = vunpack.c.l.b16 %v307
    %v1257 = vunpack.c.l.b16 %v308
    %v1258 = vunpack.c.l.b16 %v309
    %v1259 = vunpack.c.l.b16 %v310
    %v1260 = vunpack.c.l.b16 %v311
    %v1261 = vunpack.c.l.b16 %v312
    %v1262 = vunpack.c.l.b16 %v313
    %v1263 = vunpack.c.l.b16 %v314
    %v1264 = vunpack.c.l.b16 %v315
    %v1265 = vunpack.c.l.b16 %v316
    %v1266 = vunpack.c.l.b16 %v317
    %v1267 = vunpack.c.l.b16 %v318
    %v1268 = vunpack.c.l.b16 %v319
    %v1269 = vunpack.c.l.b16 %v320
    %v1270 = vunpack.c.l.b16 %v321
    %v1271 = vunpack.c.l.b16 %v322
    %v1272 = vunpack.c.l.b16 %v323
    %v1273 = vunpack.c.l.b16 %v324
    %v1274 = vunpack.c.l.b16 %v325
    %v1275 = vunpack.c.l.b16 %v326
    %v1276 = vunpack.c.l.b16 %v327
    %v1277 = vunpack.c.l.b16 %v328
    %v1278 = vunpack.c.l.b16 %v329
    %v1279 = vunpack.c.l.b16 %v330
    %v1280 = vunpack.c.l.b16 %v331
    %v1281 = vunpack.c.l.b16 %v332
    %v1282 = vunpack.c.l.b16 %v333
    %v1283 = vunpack.c.l.b16 %v334
    %v1284 = vunpack.c.l.b16 %v335
    %v1285 = vunpack.c.l.b16 %v336
    %v1286 = vunpack.c.l.b16 %v337
    %v1287 = vunpack.c.l.b16 %v338
    %v1288 = vunpack.c.l.b16 %v339
    %v1289 = vunpack.c.l.b16 %v340
    %v1290 = vunpack.c.l.b16 %v341
    %v1291 = vunpack.c.l.b16 %v342
    %v1292 = vunpack.c.l.b16 %v343
    %v1293 = vunpack.c.l.b16 %v344
    %v1294 = vunpack.c.l.b16 %v345
    %v1295 = vunpack.c.l.b16 %v346
    %v1296 = vunpack.c.l.b16 %v347
    %v1297 = vunpack.c.l.b16 %v348
    %v1298 = vunpack.c.l.b16 %v349
    %v1299 = vunpack.c.l.b16 %v350
    %v1300 = vunpack.c.l.b16 %v351
    %v1301 = vunpack.c.l.b16 %v352
    %v1302 = vunpack.c.l.b16 %v353
    %v1303 = vunpack.c.l.b16 %v354
    %v1304 = vunpack.c.l.b16 %v355
    %v1305 = vunpack.c.l.b16 %v356
    %v1306 = vunpack.c.l.b16 %v357
    %v1307 = vunpack.c.l.b16 %v358
    %v1308 = vunpack.c.l.b16 %v359
    %v1309 = vunpack.c.l.b16 %v360
    %v1310 = vunpack.c.l.b16 %v361
    %v1311 = vunpack.c.l.b16 %v362
    %v1312 = vunpack.c.l.b16 %v363
    %v1313 = vunpack.c.l.b16 %v364
    %v1314 = vunpack.c.l.b16 %v365
    %v1315 = vunpack.c.l.b16 %v366
    %v1316 = vunpack.c.l.b16 %v367
    %v1317 = vunpack.c.l.b16 %v368
    %v1318 = vunpack.c.l.b16 %v369
    %v1319 = vunpack.c.l.b16 %v370
    %v1320 = vunpack.c.l.b16 %v371
    %v1321 = vunpack.c.l.b16 %v372
    %v1322 = vunpack.c.l.b16 %v373
    %v1323 = vunpack.c.l.b16 %v374
    %v1324 = vunpack.c.l.b16 %v375
    %v1325 = vunpack.c.l.b16 %v376
    %v1326 = vunpack.c.l.b16 %v377
    %v1327 = vunpack.c.l.b16 %v378
    %v1328 = vunpack.c.l.b16 %v379
    %v1329 = vunpack.c.l.b16 %v380
    %v1330 = vunpack.c.l.b16 %v381
    %v1331 = vunpack.c.l.b16 %v382
    %v1332 = vunpack.c.l.b16 %v383
    %v1333 = vunpack.c.l.b16 %v384
    %v1334 = vunpack.c.l.b16 %v385
    %v1335 = vunpack.c.l.b16 %v386
    %v1336 = vunpack.c.l.b16 %v387
    %v1337 = vunpack.c.l.b16 %v388
    %v1338 = vunpack.c.l.b16 %v389
    %v1339 = vunpack.c.l.b16 %v390
    %v1340 = vunpack.c.l.b16 %v391
    %v1341 = vunpack.c.l.b16 %v392
    %v1342 = vunpack.c.l.b16 %v393
    %v1343 = vunpack.c.l.b16 %v394
    %v1344 = vunpack.c.l.b16 %v395
    %v1345 = vunpack.c.l.b16 %v396
    %v1346 = vunpack.c.l.b16 %v397
    %v1347 = vunpack.c.l.b16 %v398
    %v1348 = vunpack.c.l.b16 %v399
    %v1349 = vunpack.c.l.b16 %v400
    %v1350 = vunpack.c.l.b16 %v401
    %v1351 = vunpack.c.l.b16 %v402
    %v1352 = vunpack.c.l.b16 %v403
    %v1353 = vunpack.c.l.b16 %v404
    %v1354 = vunpack.c.l.b16 %v405
    %v1355 = vunpack.c.l.b16 %v406
    %v1356 = vunpack.c.l.b16 %v407
    %v1357 = vunpack.c.l.b16 %v408
    %v1358 = vunpack.c.l.b16 %v409
    %v1359 = vunpack.c.l.b16 %v410
    %v1360 = vunpack.c.l.b16 %v411
    %v1361 = vpack.c.b16 %v978, %v977
    %v1362 = vpack.c.b16 %v980, %v979
    %v1363 = vpack.c.b16 %v982, %v981
    %v1364 = vpack.c.b16 %v984, %v983
    %v1365 = vpack.c.b16 %v986, %v985
    %v1366 = vpack.c.b16 %v988, %v987
    %v1367 = vpack.c.b16 %v990, %v989
    %v1368 = vpack.c.b16 %v992, %v991
    %v1369 = vpack.c.b16 %v994, %v993
    %v1370 = vpack.c.b16 %v996, %v995
    %v1371 = vpack.c.b16 %v998, %v997
    %v1372 = vpack.c.b16 %v1000, %v999
    %v1373 = vpack.c.b16 %v1002, %v1001
    %v1374 = vpack.c.b16 %v1004, %v1003
    %v1375 = vpack.c.b16 %v1006, %v1005
    %v1376 = vpack.c.b16 %v1008, %v1007
    %v1377 = vpack.c.b16 %v1010, %v1009
    %v1378 = vpack.c.b16 %v1012, %v1011
    %v1379 = vpack.c.b16 %v1014, %v1013
    %v1380 = vpack.c.b16 %v1016, %v1015
    %v1381 = vpack.c.b16 %v1018, %v1017
    %v1382 = vpack.c.b16 %v1020, %v1019
    %v1383 = vpack.c.b16 %v1022, %v1021
    %v1384 = vpack.c.b16 %v1024, %v1023
    %v1385 = vpack.c.b16 %v1026, %v1025
    %v1386 = vpack.c.b16 %v1028, %v1027
    %v1387 = vpack.c.b16 %v1030, %v1029
    %v1388 = vpack.c.b16 %v1032, %v1031
    %v1389 = vpack.c.b16 %v1034, %v1033
    %v1390 = vpack.c.b16 %v1036, %v1035
    %v1391 = vpack.c.b16 %v1038, %v1037
    %v1392 = vpack.c.b16 %v1040, %v1039
    %v1393 = vpack.c.b16 %v1042, %v1041
    %v1394 = vpack.c.b16 %v1044, %v1043
    %v1395 = vpack.c.b16 %v1046, %v1045
    %v1396 = vpack.c.b16 %v1048, %v1047
    %v1397 = vpack.c.b16 %v1050, %v1049
    %v1398 = vpack.c.b16 %v1052, %v1051
    %v1399 = vpack.c.b16 %v1054, %v1053
    %v1400 = vpack.c.b16 %v1056, %v1055
    %v1401 = vpack.c.b16 %v1058, %v1057
    %v1402 = vpack.c.b16 %v1060, %v1059
    %v1403 = vpack.c.b16 %v1062, %v1061
    %v1404 = vpack.c.b16 %v1064, %v1063
    %v1405 = vpack.c.b16 %v1066, %v1065
    %v1406 = vpack.c.b16 %v1068, %v1067
    %v1407 = vpack.c.b16 %v1070, %v1069
    %v1408 = vpack.c.b16 %v1072, %v1071
    %v1409 = vpack.c.b16 %v1074, %v1073
    %v1410 = vpack.c.b16 %v1076, %v1075
    %v1411 = vpack.c.b16 %v1078, %v1077
    %v1412 = vpack.c.b16 %v1080, %v1079
    %v1413 = vpack.c.b16 %v1082, %v1081
    %v1414 = vpack.c.b16 %v1084, %v1083
    %v1415 = vpack.c.b16 %v1086, %v1085
    %v1416 = vpack.c.b16 %v1088, %v1087
    %v1417 = vpack.c.b16 %v1090, %v1089
    %v1418 = vpack.c.b16 %v1092, %v1091
    %v1419 = vpack.c.b16 %v1094, %v1093
    %v1420 = vpack.c.b16 %v1096, %v1095
    %v1421 = vpack.c.b16 %v1098, %v1097
    %v1422 = vpack.c.b16 %v1100, %v1099
    %v1423 = vpack.c.b16 %v1102, %v1101
    %v1424 = vpack.c.b16 %v1104, %v1103
    %v1425 = vpack.c.b16 %v1106, %v1105
    %v1426 = vpack.c.b16 %v1108, %v1107
    %v1427 = vpack.c.b16 %v1110, %v1109
    %v1428 = vpack.c.b16 %v1112, %v1111
    %v1429 = vpack.c.b16 %v1114, %v1113
    %v1430 = vpack.c.b16 %v1116, %v1115
    %v1431 = vpack.c.b16 %v1118, %v1117
    %v1432 = vpack.c.b16 %v1120, %v1119
    %v1433 = vpack.c.b16 %v1122, %v1121
    %v1434 = vpack.c.b16 %v1124, %v1123
    %v1435 = vpack.c.b16 %v1126, %v1125
    %v1436 = vpack.c.b16 %v1128, %v1127
    %v1437 = vpack.c.b16 %v1130, %v1129
    %v1438 = vpack.c.b16 %v1132, %v1131
    %v1439 = vpack.c.b16 %v1134, %v1133
    %v1440 = vpack.c.b16 %v1136, %v1135
    %v1441 = vpack.c.b16 %v1138, %v1137
    %v1442 = vpack.c.b16 %v1140, %v1139
    %v1443 = vpack.c.b16 %v1142, %v1141
    %v1444 = vpack.c.b16 %v1144, %v1143
    %v1445 = vpack.c.b16 %v1146, %v1145
    %v1446 = vpack.c.b16 %v1148, %v1147
    %v1447 = vpack.c.b16 %v1150, %v1149
    %v1448 = vpack.c.b16 %v1152, %v1151
    %v1449 = vpack.c.b16 %v1154, %v1153
    %v1450 = vpack.c.b16 %v1156, %v1155
    %v1451 = vpack.c.b16 %v1158, %v1157
    %v1452 = vpack.c.b16 %v1160, %v1159
    %v1453 = vpack.c.b16 %v1162, %v1161
    %v1454 = vpack.c.b16 %v1164, %v1163
    %v1455 = vpack.c.b16 %v1166, %v1165
    %v1456 = vpack.c.b16 %v1168, %v1167
    %v1457 = vpack.c.b16 %v1170, %v1169
    %v1458 = vpack.c.b16 %v1172, %v1171
    %v1459 = vpack.c.b16 %v1174, %v1173
    %v1460 = vpack.c.b16 %v1176, %v1175
    %v1461 = vpack.c.b16 %v1178, %v1177
    %v1462 = vpack.c.b16 %v1180, %v1179
    %v1463 = vpack.c.b16 %v1182, %v1181
    %v1464 = vpack.c.b16 %v1184, %v1183
    %v1465 = vpack.c.b16 %v1186, %v1185
    %v1466 = vpack.c.b16 %v1188, %v1187
    %v1467 = vpack.c.b16 %v1190, %v1189
    %v1468 = vpack.c.b16 %v1192, %v1191
    %v1469 = vpack.c.b16 %v1194, %v1193
    %v1470 = vpack.c.b16 %v1196, %v1195
    %v1471 = vpack.c.b16 %v1198, %v1197
    %v1472 = vpack.c.b16 %v1200, %v1199
    %v1473 = vpack.c.b16 %v1202, %v1201
    %v1474 = vpack.c.b16 %v1204, %v1203
    %v1475 = vpack.c.b16 %v1206, %v1205
    %v1476 = vpack.c.b16 %v1208, %v1207
    %v1477 = vpack.c.b16 %v1210, %v1209
    %v1478 = vpack.c.b16 %v1212, %v1211
    %v1479 = vpack.c.b16 %v1214, %v1213
    %v1480 = vpack.c.b16 %v1216, %v1215
    %v1481 = vpack.c.b16 %v1218, %v1217
    %v1482 = vpack.c.b16 %v1220, %v1219
    %v1483 = vpack.c.b16 %v1222, %v1221
    %v1484 = vpack.c.b16 %v1224, %v1223
    %v1485 = vpack.c.b16 %v1226, %v1225
    %v1486 = vpack.c.b16 %v1228, %v1227
    %v1487 = vpack.c.b16 %v1230, %v1229
    %v1488 = vpack.c.b16 %v1232, %v1231
    %v1489 = vpack.c.b16 %v1234, %v1233
    %v1490 = vpack.c.b16 %v1236, %v1235
    %v1491 = vpack.c.b16 %v1238, %v1237
    %v1492 = vpack.c.b16 %v1240, %v1239
    %v1493 = vpack.c.b16 %v1242, %v1241
    %v1494 = vpack.c.b16 %v1244, %v1243
    %v1495 = vpack.c.b16 %v1246, %v1245
    %v1496 = vpack.c.b16 %v1248, %v1247
    %v1497 = vpack.c.b16 %v1250, %v1249
    %v1498 = vpack.c.b16 %v1252, %v1251
    %v1499 = vpack.c.b16 %v1254, %v1253
    %v1500 = vpack.c.b16 %v1256, %v1255
    %v1501 = vpack.c.b16 %v1258, %v1257
    %v1502 = vpack.c.b16 %v1260, %v1259
    %v1503 = vpack.c.b16 %v1262, %v1261
    %v1504 = vpack.c.b16 %v1264, %v1263
    %v1505 = vpack.c.b16 %v1266, %v1265
    %v1506 = vpack.c.b16 %v1268, %v1267
    %v1507 = vpack.c.b16 %v1270, %v1269
    %v1508 = vpack.c.b16 %v1272, %v1271
    %v1509 = vpack.c.b16 %v1274, %v1273
    %v1510 = vpack.c.b16 %v1276, %v1275
    %v1511 = vpack.c.b16 %v1278, %v1277
    %v1512 = vpack.c.b16 %v1280, %v1279
    %v1513 = vpack.c.b16 %v1282, %v1281
    %v1514 = vpack.c.b16 %v1284, %v1283
    %v1515 = vpack.c.b16 %v1286, %v1285
    %v1516 = vpack.c.b16 %v1288, %v1287
    %v1517 = vpack.c.b16 %v1290, %v1289
    %v1518 = vpack.c.b16 %v1292, %v1291
    %v1519 = vpack.c.b16 %v1294, %v1293
    %v1520 = vpack.c.b16 %v1296, %v1295
    %v1521 = vpack.c.b16 %v1298, %v1297
    %v1522 = vpack.c.b16 %v1300, %v1299
    %v1523 = vpack.c.b16 %v1302, %v1301
    %v1524 = vpack.c.b16 %v1304, %v1303
    %v1525 = vpack.c.b16 %v1306, %v1305
    %v1526 = vpack.c.b16 %v1308, %v1307
    %v1527 = vpack.c.b16 %v1310, %v1309
    %v1528 = vpack.c.b16 %v1312, %v1311
    %v1529 = vpack.c.b16 %v1314, %v1313
    %v1530 = vpack.c.b16 %v1316, %v1315
    %v1531 = vpack.c.b16 %v1318, %v1317
    %v1532 = vpack.c.b16 %v1320, %v1319
    %v1533 = vpack.c.b16 %v1322, %v1321
    %v1534 = vpack.c.b16 %v1324, %v1323
    %v1535 = vpack.c.b16 %v1326, %v1325
    %v1536 = vpack.c.b16 %v1328, %v1327
    %v1537 = vpack.c.b16 %v1330, %v1329
    %v1538 = vpack.c.b16 %v1332, %v1331
    %v1539 = vpack.c.b16 %v1334, %v1333
    %v1540 = vpack.c.b16 %v1336, %v1335
    %v1541 = vpack.c.b16 %v1338, %v1337
    %v1542 = vpack.c.b16 %v1340, %v1339
    %v1543 = vpack.c.b16 %v1342, %v1341
    %v1544 = vpack.c.b16 %v1344, %v1343
    %v1545 = vpack.c.b16 %v1346, %v1345
    %v1546 = vpack.c.b16 %v1348, %v1347
    %v1547 = vpack.c.b16 %v1350, %v1349
    %v1548 = vpack.c.b16 %v1352, %v1351
    %v1549 = vpack.c.b16 %v1354, %v1353
    %v1550 = vpack.c.b16 %v1356, %v1355
    %v1551 = vpack.c.b16 %v1358, %v1357
    %v1552 = vpack.c.b16 %v1360, %v1359
    %1745 = vmatprep.subr.bf16.mxu0 0
    %1746 = vmatpush1.bf16.msra.mxu0 %v1368
    %1747 = vmatprep.subr.bf16.mxu0 0
    %1748 = vmatpush1.bf16.msra.mxu0 %v1367
    %1749 = vmatprep.subr.bf16.mxu0 0
    %1750 = vmatpush1.bf16.msra.mxu0 %v1366
    %1751 = vmatprep.subr.bf16.mxu0 0
    %1752 = vmatpush1.bf16.msra.mxu0 %v1365
    %1753 = vmatprep.subr.bf16.mxu0 0
    %1754 = vmatpush1.bf16.msra.mxu0 %v1364
    %1755 = vmatprep.subr.bf16.mxu0 0
    %1756 = vmatpush1.bf16.msra.mxu0 %v1363
    %1757 = vmatprep.subr.bf16.mxu0 0
    %1758 = vmatpush1.bf16.msra.mxu0 %v1362
    %1759 = vmatprep.subr.bf16.mxu0 0
    %1760 = vmatpush1.bf16.msra.mxu0 %v1361
    %1761 = vmatprep.subr.bf16.mxu0 0
    %1762 = vmatpush2.bf16.msra.mxu0 %v1376
    %1763 = vmatprep.subr.bf16.mxu0 0
    %1764 = vmatpush2.bf16.msra.mxu0 %v1375
    %1765 = vmatprep.subr.bf16.mxu0 0
    %1766 = vmatpush2.bf16.msra.mxu0 %v1374
    %1767 = vmatprep.subr.bf16.mxu0 0
    %1768 = vmatpush2.bf16.msra.mxu0 %v1373
    %1769 = vmatprep.subr.bf16.mxu0 0
    %1770 = vmatpush2.bf16.msra.mxu0 %v1372
    %1771 = vmatprep.subr.bf16.mxu0 0
    %1772 = vmatpush2.bf16.msra.mxu0 %v1371
    %1773 = vmatprep.subr.bf16.mxu0 0
    %1774 = vmatpush2.bf16.msra.mxu0 %v1370
    %1775 = vmatprep.subr.bf16.mxu0 0
    %1776 = vmatpush2.bf16.msra.mxu0 %v1369
    %1777 = vmatprep.mubr.bf16.mxu0 %v459
    %1778 = vmatmul.mubr.bf16.gmra.mxu0 %v445
    %v1779 = vpop.f32.mrf.mxu0
    %v1780 = vadd.f32 %v417, %v1779
    %v1781 = vpop.f32.mrf.mxu0
    %v1782 = vpop.f32.mrf.mxu0
    %v1783 = vpop.f32.mrf.mxu0
    %1784 = vdwg.mxu0
    %1785 = vmatprep.subr.bf16.mxu0 0
    %1786 = vmatpush1.bf16.msra.mxu0 %v1384
    %1787 = vmatprep.subr.bf16.mxu0 0
    %1788 = vmatpush1.bf16.msra.mxu0 %v1383
    %1789 = vmatprep.subr.bf16.mxu0 0
    %1790 = vmatpush1.bf16.msra.mxu0 %v1382
    %1791 = vmatprep.subr.bf16.mxu0 0
    %1792 = vmatpush1.bf16.msra.mxu0 %v1381
    %1793 = vmatprep.subr.bf16.mxu0 0
    %1794 = vmatpush1.bf16.msra.mxu0 %v1380
    %1795 = vmatprep.subr.bf16.mxu0 0
    %1796 = vmatpush1.bf16.msra.mxu0 %v1379
    %1797 = vmatprep.subr.bf16.mxu0 0
    %1798 = vmatpush1.bf16.msra.mxu0 %v1378
    %1799 = vmatprep.subr.bf16.mxu0 0
    %1800 = vmatpush1.bf16.msra.mxu0 %v1377
    %1801 = vmatprep.subr.bf16.mxu0 0
    %1802 = vmatpush2.bf16.msra.mxu0 %v1392
    %1803 = vmatprep.subr.bf16.mxu0 0
    %1804 = vmatpush2.bf16.msra.mxu0 %v1391
    %1805 = vmatprep.subr.bf16.mxu0 0
    %1806 = vmatpush2.bf16.msra.mxu0 %v1390
    %1807 = vmatprep.subr.bf16.mxu0 0
    %1808 = vmatpush2.bf16.msra.mxu0 %v1389
    %1809 = vmatprep.subr.bf16.mxu0 0
    %1810 = vmatpush2.bf16.msra.mxu0 %v1388
    %1811 = vmatprep.subr.bf16.mxu0 0
    %1812 = vmatpush2.bf16.msra.mxu0 %v1387
    %1813 = vmatprep.subr.bf16.mxu0 0
    %1814 = vmatpush2.bf16.msra.mxu0 %v1386
    %1815 = vmatprep.subr.bf16.mxu0 0
    %1816 = vmatpush2.bf16.msra.mxu0 %v1385
    %1817 = vmatprep.mubr.bf16.mxu0 %v469
    %1818 = vmatmul.mubr.bf16.gmra.mxu0 %v467
    %v1819 = vpop.f32.mrf.mxu0
    %v1820 = vadd.f32 %v1780, %v1819
    %v1821 = vpop.f32.mrf.mxu0
    %v1822 = vpop.f32.mrf.mxu0
    %v1823 = vpop.f32.mrf.mxu0
    %1824 = vdwg.mxu0
    %1825 = vmatprep.subr.bf16.mxu0 0
    %1826 = vmatpush1.bf16.msra.mxu0 %v1400
    %1827 = vmatprep.subr.bf16.mxu0 0
    %1828 = vmatpush1.bf16.msra.mxu0 %v1399
    %1829 = vmatprep.subr.bf16.mxu0 0
    %1830 = vmatpush1.bf16.msra.mxu0 %v1398
    %1831 = vmatprep.subr.bf16.mxu0 0
    %1832 = vmatpush1.bf16.msra.mxu0 %v1397
    %1833 = vmatprep.subr.bf16.mxu0 0
    %1834 = vmatpush1.bf16.msra.mxu0 %v1396
    %1835 = vmatprep.subr.bf16.mxu0 0
    %1836 = vmatpush1.bf16.msra.mxu0 %v1395
    %1837 = vmatprep.subr.bf16.mxu0 0
    %1838 = vmatpush1.bf16.msra.mxu0 %v1394
    %1839 = vmatprep.subr.bf16.mxu0 0
    %1840 = vmatpush1.bf16.msra.mxu0 %v1393
    %1841 = vmatprep.subr.bf16.mxu0 0
    %1842 = vmatpush2.bf16.msra.mxu0 %v1408
    %1843 = vmatprep.subr.bf16.mxu0 0
    %1844 = vmatpush2.bf16.msra.mxu0 %v1407
    %1845 = vmatprep.subr.bf16.mxu0 0
    %1846 = vmatpush2.bf16.msra.mxu0 %v1406
    %1847 = vmatprep.subr.bf16.mxu0 0
    %1848 = vmatpush2.bf16.msra.mxu0 %v1405
    %1849 = vmatprep.subr.bf16.mxu0 0
    %1850 = vmatpush2.bf16.msra.mxu0 %v1404
    %1851 = vmatprep.subr.bf16.mxu0 0
    %1852 = vmatpush2.bf16.msra.mxu0 %v1403
    %1853 = vmatprep.subr.bf16.mxu0 0
    %1854 = vmatpush2.bf16.msra.mxu0 %v1402
    %1855 = vmatprep.subr.bf16.mxu0 0
    %1856 = vmatpush2.bf16.msra.mxu0 %v1401
    %1857 = vmatprep.mubr.bf16.mxu0 %v466
    %1858 = vmatmul.mubr.bf16.gmra.mxu0 %v452
    %v1859 = vpop.f32.mrf.mxu0
    %v1860 = vadd.f32 %v1820, %v1859
    %v1861 = vpop.f32.mrf.mxu0
    %v1862 = vpop.f32.mrf.mxu0
    %v1863 = vpop.f32.mrf.mxu0
    %1864 = vdwg.mxu0
    %1865 = vmatprep.subr.bf16.mxu0 0
    %1866 = vmatpush1.bf16.msra.mxu0 %v1416
    %1867 = vmatprep.subr.bf16.mxu0 0
    %1868 = vmatpush1.bf16.msra.mxu0 %v1415
    %1869 = vmatprep.subr.bf16.mxu0 0
    %1870 = vmatpush1.bf16.msra.mxu0 %v1414
    %1871 = vmatprep.subr.bf16.mxu0 0
    %1872 = vmatpush1.bf16.msra.mxu0 %v1413
    %1873 = vmatprep.subr.bf16.mxu0 0
    %1874 = vmatpush1.bf16.msra.mxu0 %v1412
    %1875 = vmatprep.subr.bf16.mxu0 0
    %1876 = vmatpush1.bf16.msra.mxu0 %v1411
    %1877 = vmatprep.subr.bf16.mxu0 0
    %1878 = vmatpush1.bf16.msra.mxu0 %v1410
    %1879 = vmatprep.subr.bf16.mxu0 0
    %1880 = vmatpush1.bf16.msra.mxu0 %v1409
    %1881 = vmatprep.subr.bf16.mxu0 0
    %1882 = vmatpush2.bf16.msra.mxu0 %v1424
    %1883 = vmatprep.subr.bf16.mxu0 0
    %1884 = vmatpush2.bf16.msra.mxu0 %v1423
    %1885 = vmatprep.subr.bf16.mxu0 0
    %1886 = vmatpush2.bf16.msra.mxu0 %v1422
    %1887 = vmatprep.subr.bf16.mxu0 0
    %1888 = vmatpush2.bf16.msra.mxu0 %v1421
    %1889 = vmatprep.subr.bf16.mxu0 0
    %1890 = vmatpush2.bf16.msra.mxu0 %v1420
    %1891 = vmatprep.subr.bf16.mxu0 0
    %1892 = vmatpush2.bf16.msra.mxu0 %v1419
    %1893 = vmatprep.subr.bf16.mxu0 0
    %1894 = vmatpush2.bf16.msra.mxu0 %v1418
    %1895 = vmatprep.subr.bf16.mxu0 0
    %1896 = vmatpush2.bf16.msra.mxu0 %v1417
    %1897 = vmatprep.mubr.bf16.mxu0 %v470
    %1898 = vmatmul.mubr.bf16.gmra.mxu0 %v468
    %v1899 = vpop.f32.mrf.mxu0
    %v1900 = vadd.f32 %v1860, %v1899
    %v1901 = vpop.f32.mrf.mxu0
    %v1902 = vpop.f32.mrf.mxu0
    %v1903 = vpop.f32.mrf.mxu0
    %1904 = vdwg.mxu0
    %1905 = vmatprep.subr.bf16.mxu0 0
    %1906 = vmatpush1.bf16.msra.mxu0 %v1432
    %1907 = vmatprep.subr.bf16.mxu0 0
    %1908 = vmatpush1.bf16.msra.mxu0 %v1431
    %1909 = vmatprep.subr.bf16.mxu0 0
    %1910 = vmatpush1.bf16.msra.mxu0 %v1430
    %1911 = vmatprep.subr.bf16.mxu0 0
    %1912 = vmatpush1.bf16.msra.mxu0 %v1429
    %1913 = vmatprep.subr.bf16.mxu0 0
    %1914 = vmatpush1.bf16.msra.mxu0 %v1428
    %1915 = vmatprep.subr.bf16.mxu0 0
    %1916 = vmatpush1.bf16.msra.mxu0 %v1427
    %1917 = vmatprep.subr.bf16.mxu0 0
    %1918 = vmatpush1.bf16.msra.mxu0 %v1426
    %1919 = vmatprep.subr.bf16.mxu0 0
    %1920 = vmatpush1.bf16.msra.mxu0 %v1425
    %1921 = vmatprep.subr.bf16.mxu0 0
    %1922 = vmatpush2.bf16.msra.mxu0 %v1440
    %1923 = vmatprep.subr.bf16.mxu0 0
    %1924 = vmatpush2.bf16.msra.mxu0 %v1439
    %1925 = vmatprep.subr.bf16.mxu0 0
    %1926 = vmatpush2.bf16.msra.mxu0 %v1438
    %1927 = vmatprep.subr.bf16.mxu0 0
    %1928 = vmatpush2.bf16.msra.mxu0 %v1437
    %1929 = vmatprep.subr.bf16.mxu0 0
    %1930 = vmatpush2.bf16.msra.mxu0 %v1436
    %1931 = vmatprep.subr.bf16.mxu0 0
    %1932 = vmatpush2.bf16.msra.mxu0 %v1435
    %1933 = vmatprep.subr.bf16.mxu0 0
    %1934 = vmatpush2.bf16.msra.mxu0 %v1434
    %1935 = vmatprep.subr.bf16.mxu0 0
    %1936 = vmatpush2.bf16.msra.mxu0 %v1433
    %1937 = vmatprep.mubr.bf16.mxu0 %v508
    %1938 = vmatmul.mubr.bf16.gmra.mxu0 %v494
    %v1939 = vpop.f32.mrf.mxu0
    %v1940 = vadd.f32 %v1900, %v1939
    %v1941 = vpop.f32.mrf.mxu0
    %v1942 = vpop.f32.mrf.mxu0
    %v1943 = vpop.f32.mrf.mxu0
    %1944 = vdwg.mxu0
    %1945 = vmatprep.subr.bf16.mxu0 0
    %1946 = vmatpush1.bf16.msra.mxu0 %v1448
    %1947 = vmatprep.subr.bf16.mxu0 0
    %1948 = vmatpush1.bf16.msra.mxu0 %v1447
    %1949 = vmatprep.subr.bf16.mxu0 0
    %1950 = vmatpush1.bf16.msra.mxu0 %v1446
    %1951 = vmatprep.subr.bf16.mxu0 0
    %1952 = vmatpush1.bf16.msra.mxu0 %v1445
    %1953 = vmatprep.subr.bf16.mxu0 0
    %1954 = vmatpush1.bf16.msra.mxu0 %v1444
    %1955 = vmatprep.subr.bf16.mxu0 0
    %1956 = vmatpush1.bf16.msra.mxu0 %v1443
    %1957 = vmatprep.subr.bf16.mxu0 0
    %1958 = vmatpush1.bf16.msra.mxu0 %v1442
    %1959 = vmatprep.subr.bf16.mxu0 0
    %1960 = vmatpush1.bf16.msra.mxu0 %v1441
    %1961 = vmatprep.subr.bf16.mxu0 0
    %1962 = vmatpush2.bf16.msra.mxu0 %v1456
    %1963 = vmatprep.subr.bf16.mxu0 0
    %1964 = vmatpush2.bf16.msra.mxu0 %v1455
    %1965 = vmatprep.subr.bf16.mxu0 0
    %1966 = vmatpush2.bf16.msra.mxu0 %v1454
    %1967 = vmatprep.subr.bf16.mxu0 0
    %1968 = vmatpush2.bf16.msra.mxu0 %v1453
    %1969 = vmatprep.subr.bf16.mxu0 0
    %1970 = vmatpush2.bf16.msra.mxu0 %v1452
    %1971 = vmatprep.subr.bf16.mxu0 0
    %1972 = vmatpush2.bf16.msra.mxu0 %v1451
    %1973 = vmatprep.subr.bf16.mxu0 0
    %1974 = vmatpush2.bf16.msra.mxu0 %v1450
    %1975 = vmatprep.subr.bf16.mxu0 0
    %1976 = vmatpush2.bf16.msra.mxu0 %v1449
    %1977 = vmatprep.mubr.bf16.mxu0 %v518
    %1978 = vmatmul.mubr.bf16.gmra.mxu0 %v516
    %v1979 = vpop.f32.mrf.mxu0
    %v1980 = vadd.f32 %v1940, %v1979
    %v1981 = vpop.f32.mrf.mxu0
    %v1982 = vpop.f32.mrf.mxu0
    %v1983 = vpop.f32.mrf.mxu0
    %1984 = vdwg.mxu0
    %1985 = vmatprep.subr.bf16.mxu0 0
    %1986 = vmatpush1.bf16.msra.mxu0 %v1464
    %1987 = vmatprep.subr.bf16.mxu0 0
    %1988 = vmatpush1.bf16.msra.mxu0 %v1463
    %1989 = vmatprep.subr.bf16.mxu0 0
    %1990 = vmatpush1.bf16.msra.mxu0 %v1462
    %1991 = vmatprep.subr.bf16.mxu0 0
    %1992 = vmatpush1.bf16.msra.mxu0 %v1461
    %1993 = vmatprep.subr.bf16.mxu0 0
    %1994 = vmatpush1.bf16.msra.mxu0 %v1460
    %1995 = vmatprep.subr.bf16.mxu0 0
    %1996 = vmatpush1.bf16.msra.mxu0 %v1459
    %1997 = vmatprep.subr.bf16.mxu0 0
    %1998 = vmatpush1.bf16.msra.mxu0 %v1458
    %1999 = vmatprep.subr.bf16.mxu0 0
    %2000 = vmatpush1.bf16.msra.mxu0 %v1457
    %2001 = vmatprep.subr.bf16.mxu0 0
    %2002 = vmatpush2.bf16.msra.mxu0 %v1472
    %2003 = vmatprep.subr.bf16.mxu0 0
    %2004 = vmatpush2.bf16.msra.mxu0 %v1471
    %2005 = vmatprep.subr.bf16.mxu0 0
    %2006 = vmatpush2.bf16.msra.mxu0 %v1470
    %2007 = vmatprep.subr.bf16.mxu0 0
    %2008 = vmatpush2.bf16.msra.mxu0 %v1469
    %2009 = vmatprep.subr.bf16.mxu0 0
    %2010 = vmatpush2.bf16.msra.mxu0 %v1468
    %2011 = vmatprep.subr.bf16.mxu0 0
    %2012 = vmatpush2.bf16.msra.mxu0 %v1467
    %2013 = vmatprep.subr.bf16.mxu0 0
    %2014 = vmatpush2.bf16.msra.mxu0 %v1466
    %2015 = vmatprep.subr.bf16.mxu0 0
    %2016 = vmatpush2.bf16.msra.mxu0 %v1465
    %2017 = vmatprep.mubr.bf16.mxu0 %v515
    %2018 = vmatmul.mubr.bf16.gmra.mxu0 %v501
    %v2019 = vpop.f32.mrf.mxu0
    %v2020 = vadd.f32 %v1980, %v2019
    %v2021 = vpop.f32.mrf.mxu0
    %v2022 = vpop.f32.mrf.mxu0
    %v2023 = vpop.f32.mrf.mxu0
    %2024 = vdwg.mxu0
    %2025 = vmatprep.subr.bf16.mxu0 0
    %2026 = vmatpush1.bf16.msra.mxu0 %v1480
    %2027 = vmatprep.subr.bf16.mxu0 0
    %2028 = vmatpush1.bf16.msra.mxu0 %v1479
    %2029 = vmatprep.subr.bf16.mxu0 0
    %2030 = vmatpush1.bf16.msra.mxu0 %v1478
    %2031 = vmatprep.subr.bf16.mxu0 0
    %2032 = vmatpush1.bf16.msra.mxu0 %v1477
    %2033 = vmatprep.subr.bf16.mxu0 0
    %2034 = vmatpush1.bf16.msra.mxu0 %v1476
    %2035 = vmatprep.subr.bf16.mxu0 0
    %2036 = vmatpush1.bf16.msra.mxu0 %v1475
    %2037 = vmatprep.subr.bf16.mxu0 0
    %2038 = vmatpush1.bf16.msra.mxu0 %v1474
    %2039 = vmatprep.subr.bf16.mxu0 0
    %2040 = vmatpush1.bf16.msra.mxu0 %v1473
    %2041 = vmatprep.subr.bf16.mxu0 0
    %2042 = vmatpush2.bf16.msra.mxu0 %v1488
    %2043 = vmatprep.subr.bf16.mxu0 0
    %2044 = vmatpush2.bf16.msra.mxu0 %v1487
    %2045 = vmatprep.subr.bf16.mxu0 0
    %2046 = vmatpush2.bf16.msra.mxu0 %v1486
    %2047 = vmatprep.subr.bf16.mxu0 0
    %2048 = vmatpush2.bf16.msra.mxu0 %v1485
    %2049 = vmatprep.subr.bf16.mxu0 0
    %2050 = vmatpush2.bf16.msra.mxu0 %v1484
    %2051 = vmatprep.subr.bf16.mxu0 0
    %2052 = vmatpush2.bf16.msra.mxu0 %v1483
    %2053 = vmatprep.subr.bf16.mxu0 0
    %2054 = vmatpush2.bf16.msra.mxu0 %v1482
    %2055 = vmatprep.subr.bf16.mxu0 0
    %2056 = vmatpush2.bf16.msra.mxu0 %v1481
    %2057 = vmatprep.mubr.bf16.mxu0 %v519
    %2058 = vmatmul.mubr.bf16.gmra.mxu0 %v517
    %v2059 = vpop.f32.mrf.mxu0
    %v2060 = vadd.f32 %v2020, %v2059
    %v2061 = vpop.f32.mrf.mxu0
    %v2062 = vpop.f32.mrf.mxu0
    %v2063 = vpop.f32.mrf.mxu0
    %2064 = vdwg.mxu0
    %2065 = vmatprep.subr.bf16.mxu0 0
    %2066 = vmatpush1.bf16.msra.mxu0 %v1496
    %2067 = vmatprep.subr.bf16.mxu0 0
    %2068 = vmatpush1.bf16.msra.mxu0 %v1495
    %2069 = vmatprep.subr.bf16.mxu0 0
    %2070 = vmatpush1.bf16.msra.mxu0 %v1494
    %2071 = vmatprep.subr.bf16.mxu0 0
    %2072 = vmatpush1.bf16.msra.mxu0 %v1493
    %2073 = vmatprep.subr.bf16.mxu0 0
    %2074 = vmatpush1.bf16.msra.mxu0 %v1492
    %2075 = vmatprep.subr.bf16.mxu0 0
    %2076 = vmatpush1.bf16.msra.mxu0 %v1491
    %2077 = vmatprep.subr.bf16.mxu0 0
    %2078 = vmatpush1.bf16.msra.mxu0 %v1490
    %2079 = vmatprep.subr.bf16.mxu0 0
    %2080 = vmatpush1.bf16.msra.mxu0 %v1489
    %2081 = vmatprep.subr.bf16.mxu0 0
    %2082 = vmatpush2.bf16.msra.mxu0 %v1504
    %2083 = vmatprep.subr.bf16.mxu0 0
    %2084 = vmatpush2.bf16.msra.mxu0 %v1503
    %2085 = vmatprep.subr.bf16.mxu0 0
    %2086 = vmatpush2.bf16.msra.mxu0 %v1502
    %2087 = vmatprep.subr.bf16.mxu0 0
    %2088 = vmatpush2.bf16.msra.mxu0 %v1501
    %2089 = vmatprep.subr.bf16.mxu0 0
    %2090 = vmatpush2.bf16.msra.mxu0 %v1500
    %2091 = vmatprep.subr.bf16.mxu0 0
    %2092 = vmatpush2.bf16.msra.mxu0 %v1499
    %2093 = vmatprep.subr.bf16.mxu0 0
    %2094 = vmatpush2.bf16.msra.mxu0 %v1498
    %2095 = vmatprep.subr.bf16.mxu0 0
    %2096 = vmatpush2.bf16.msra.mxu0 %v1497
    %2097 = vmatprep.mubr.bf16.mxu0 %v557
    %2098 = vmatmul.mubr.bf16.gmra.mxu0 %v543
    %v2099 = vpop.f32.mrf.mxu0
    %v2100 = vadd.f32 %v2060, %v2099
    %v2101 = vpop.f32.mrf.mxu0
    %v2102 = vpop.f32.mrf.mxu0
    %v2103 = vpop.f32.mrf.mxu0
    %2104 = vdwg.mxu0
    %2105 = vmatprep.subr.bf16.mxu0 0
    %2106 = vmatpush1.bf16.msra.mxu0 %v1512
    %2107 = vmatprep.subr.bf16.mxu0 0
    %2108 = vmatpush1.bf16.msra.mxu0 %v1511
    %2109 = vmatprep.subr.bf16.mxu0 0
    %2110 = vmatpush1.bf16.msra.mxu0 %v1510
    %2111 = vmatprep.subr.bf16.mxu0 0
    %2112 = vmatpush1.bf16.msra.mxu0 %v1509
    %2113 = vmatprep.subr.bf16.mxu0 0
    %2114 = vmatpush1.bf16.msra.mxu0 %v1508
    %2115 = vmatprep.subr.bf16.mxu0 0
    %2116 = vmatpush1.bf16.msra.mxu0 %v1507
    %2117 = vmatprep.subr.bf16.mxu0 0
    %2118 = vmatpush1.bf16.msra.mxu0 %v1506
    %2119 = vmatprep.subr.bf16.mxu0 0
    %2120 = vmatpush1.bf16.msra.mxu0 %v1505
    %2121 = vmatprep.subr.bf16.mxu0 0
    %2122 = vmatpush2.bf16.msra.mxu0 %v1520
    %2123 = vmatprep.subr.bf16.mxu0 0
    %2124 = vmatpush2.bf16.msra.mxu0 %v1519
    %2125 = vmatprep.subr.bf16.mxu0 0
    %2126 = vmatpush2.bf16.msra.mxu0 %v1518
    %2127 = vmatprep.subr.bf16.mxu0 0
    %2128 = vmatpush2.bf16.msra.mxu0 %v1517
    %2129 = vmatprep.subr.bf16.mxu0 0
    %2130 = vmatpush2.bf16.msra.mxu0 %v1516
    %2131 = vmatprep.subr.bf16.mxu0 0
    %2132 = vmatpush2.bf16.msra.mxu0 %v1515
    %2133 = vmatprep.subr.bf16.mxu0 0
    %2134 = vmatpush2.bf16.msra.mxu0 %v1514
    %2135 = vmatprep.subr.bf16.mxu0 0
    %2136 = vmatpush2.bf16.msra.mxu0 %v1513
    %2137 = vmatprep.mubr.bf16.mxu0 %v567
    %2138 = vmatmul.mubr.bf16.gmra.mxu0 %v565
    %v2139 = vpop.f32.mrf.mxu0
    %v2140 = vadd.f32 %v2100, %v2139
    %v2141 = vpop.f32.mrf.mxu0
    %v2142 = vpop.f32.mrf.mxu0
    %v2143 = vpop.f32.mrf.mxu0
    %2144 = vdwg.mxu0
    %2145 = vmatprep.subr.bf16.mxu0 0
    %2146 = vmatpush1.bf16.msra.mxu0 %v1528
    %2147 = vmatprep.subr.bf16.mxu0 0
    %2148 = vmatpush1.bf16.msra.mxu0 %v1527
    %2149 = vmatprep.subr.bf16.mxu0 0
    %2150 = vmatpush1.bf16.msra.mxu0 %v1526
    %2151 = vmatprep.subr.bf16.mxu0 0
    %2152 = vmatpush1.bf16.msra.mxu0 %v1525
    %2153 = vmatprep.subr.bf16.mxu0 0
    %2154 = vmatpush1.bf16.msra.mxu0 %v1524
    %2155 = vmatprep.subr.bf16.mxu0 0
    %2156 = vmatpush1.bf16.msra.mxu0 %v1523
    %2157 = vmatprep.subr.bf16.mxu0 0
    %2158 = vmatpush1.bf16.msra.mxu0 %v1522
    %2159 = vmatprep.subr.bf16.mxu0 0
    %2160 = vmatpush1.bf16.msra.mxu0 %v1521
    %2161 = vmatprep.subr.bf16.mxu0 0
    %2162 = vmatpush2.bf16.msra.mxu0 %v1536
    %2163 = vmatprep.subr.bf16.mxu0 0
    %2164 = vmatpush2.bf16.msra.mxu0 %v1535
    %2165 = vmatprep.subr.bf16.mxu0 0
    %2166 = vmatpush2.bf16.msra.mxu0 %v1534
    %2167 = vmatprep.subr.bf16.mxu0 0
    %2168 = vmatpush2.bf16.msra.mxu0 %v1533
    %2169 = vmatprep.subr.bf16.mxu0 0
    %2170 = vmatpush2.bf16.msra.mxu0 %v1532
    %2171 = vmatprep.subr.bf16.mxu0 0
    %2172 = vmatpush2.bf16.msra.mxu0 %v1531
    %2173 = vmatprep.subr.bf16.mxu0 0
    %2174 = vmatpush2.bf16.msra.mxu0 %v1530
    %2175 = vmatprep.subr.bf16.mxu0 0
    %2176 = vmatpush2.bf16.msra.mxu0 %v1529
    %2177 = vmatprep.mubr.bf16.mxu0 %v564
    %2178 = vmatmul.mubr.bf16.gmra.mxu0 %v550
    %v2179 = vpop.f32.mrf.mxu0
    %v2180 = vadd.f32 %v2140, %v2179
    %v2181 = vpop.f32.mrf.mxu0
    %v2182 = vpop.f32.mrf.mxu0
    %v2183 = vpop.f32.mrf.mxu0
    %2184 = vdwg.mxu0
    %2185 = vmatprep.subr.bf16.mxu0 0
    %2186 = vmatpush1.bf16.msra.mxu0 %v1544
    %2187 = vmatprep.subr.bf16.mxu0 0
    %2188 = vmatpush1.bf16.msra.mxu0 %v1543
    %2189 = vmatprep.subr.bf16.mxu0 0
    %2190 = vmatpush1.bf16.msra.mxu0 %v1542
    %2191 = vmatprep.subr.bf16.mxu0 0
    %2192 = vmatpush1.bf16.msra.mxu0 %v1541
    %2193 = vmatprep.subr.bf16.mxu0 0
    %2194 = vmatpush1.bf16.msra.mxu0 %v1540
    %2195 = vmatprep.subr.bf16.mxu0 0
    %2196 = vmatpush1.bf16.msra.mxu0 %v1539
    %2197 = vmatprep.subr.bf16.mxu0 0
    %2198 = vmatpush1.bf16.msra.mxu0 %v1538
    %2199 = vmatprep.subr.bf16.mxu0 0
    %2200 = vmatpush1.bf16.msra.mxu0 %v1537
    %2201 = vmatprep.subr.bf16.mxu0 0
    %2202 = vmatpush2.bf16.msra.mxu0 %v1552
    %2203 = vmatprep.subr.bf16.mxu0 0
    %2204 = vmatpush2.bf16.msra.mxu0 %v1551
    %2205 = vmatprep.subr.bf16.mxu0 0
    %2206 = vmatpush2.bf16.msra.mxu0 %v1550
    %2207 = vmatprep.subr.bf16.mxu0 0
    %2208 = vmatpush2.bf16.msra.mxu0 %v1549
    %2209 = vmatprep.subr.bf16.mxu0 0
    %2210 = vmatpush2.bf16.msra.mxu0 %v1548
    %2211 = vmatprep.subr.bf16.mxu0 0
    %2212 = vmatpush2.bf16.msra.mxu0 %v1547
    %2213 = vmatprep.subr.bf16.mxu0 0
    %2214 = vmatpush2.bf16.msra.mxu0 %v1546
    %2215 = vmatprep.subr.bf16.mxu0 0
    %2216 = vmatpush2.bf16.msra.mxu0 %v1545
    %2217 = vmatprep.mubr.bf16.mxu0 %v568
    %2218 = vmatmul.mubr.bf16.gmra.mxu0 %v566
    %v2219 = vpop.f32.mrf.mxu0
    %v2220 = vadd.f32 %v2180, %v2219
    %v2221 = vpop.f32.mrf.mxu0
    %v2222 = vpop.f32.mrf.mxu0
    %v2223 = vpop.f32.mrf.mxu0
    %2224 = vdwg.mxu0
    %v2225 = vmax.f32 %v2220, 0.0
    %v2226 = vld [vmem:[%s5] sm:$0x3]
    %vm2227 = vcmp.ge.u32.totalorder %v2226, 2147483648
    %v2228 = vmul.f32 %v2225, 2.0
    %v2229 = vsel %vm2227, %v2228, 0.0
    %v2230 = vpack.c.bf16 %v2229, %v2229
    %v2231 = vld [vmem:[%s3] sm:$0xf]
    %v2232 = vld [vmem:[%s3 + $0x4] sm:$0xf]
    %v2233 = vld [vmem:[%s3 + $0x8] sm:$0xf]
    %v2234 = vld [vmem:[%s3 + $0xc] sm:$0xf]
    %v2235 = vld [vmem:[%s3 + $0x10] sm:$0xf]
    %v2236 = vld [vmem:[%s3 + $0x14] sm:$0xf]
    %v2237 = vld [vmem:[%s3 + $0x18] sm:$0x1]
    %v2238 = vld [vmem:[%s4] sm:$0x1]
    %v2240 = vlaneseq
    %v2241 = vshrl.u32 %v2240, 7
    %v2242 = vsub.s32 0, %v2241
    %v2243 = vrot.slane %v2238, %v2242
    %v2252 = vunpack.c.l.b16 %v2231
    %v2253 = vunpack.c.l.b16 %v2232
    %v2254 = vunpack.c.l.b16 %v2233
    %v2255 = vunpack.c.l.b16 %v2234
    %v2256 = vunpack.c.l.b16 %v2235
    %v2257 = vunpack.c.l.b16 %v2236
    %v2258 = vunpack.c.l.b16 %v2237
    %v2259 = vpack.c.b16 %v2253, %v2252
    %v2260 = vpack.c.b16 %v2255, %v2254
    %v2261 = vpack.c.b16 %v2257, %v2256
    %v2262 = vpack.c.b16 %v2258, %v2258
    %vm2266 = vcmask 408576
    %v2268 = vsel %vm2266, %v2230, 0
    %vm2270 = vcmask 1040384
    %v2272 = vsel %vm2270, %v2262, 0
    %2274 = vmatprep.subr.bf16.mxu0 0
    %2275 = vmatpush1.bf16.msra.mxu0 0
    %2276 = vmatprep.subr.bf16.mxu0 0
    %2277 = vmatpush1.bf16.msra.mxu0 0
    %2278 = vmatprep.subr.bf16.mxu0 0
    %2279 = vmatpush1.bf16.msra.mxu0 0
    %2280 = vmatprep.subr.bf16.mxu0 0
    %2281 = vmatpush1.bf16.msra.mxu0 0
    %2282 = vmatprep.subr.bf16.mxu0 0
    %2283 = vmatpush1.bf16.msra.mxu0 %v2272
    %2284 = vmatprep.subr.bf16.mxu0 0
    %2285 = vmatpush1.bf16.msra.mxu0 %v2261
    %2286 = vmatprep.subr.bf16.mxu0 0
    %2287 = vmatpush1.bf16.msra.mxu0 %v2260
    %2288 = vmatprep.subr.bf16.mxu0 0
    %2289 = vmatpush1.bf16.msra.mxu0 %v2259
    %2290 = vmatprep.subr.bf16.mxu0 0
    %2291 = vmatpush2.bf16.msra.mxu0 0
    %2292 = vmatprep.subr.bf16.mxu0 0
    %2293 = vmatpush2.bf16.msra.mxu0 0
    %2294 = vmatprep.subr.bf16.mxu0 0
    %2295 = vmatpush2.bf16.msra.mxu0 0
    %2296 = vmatprep.subr.bf16.mxu0 0
    %2297 = vmatpush2.bf16.msra.mxu0 0
    %2298 = vmatprep.subr.bf16.mxu0 0
    %2299 = vmatpush2.bf16.msra.mxu0 0
    %2300 = vmatprep.subr.bf16.mxu0 0
    %2301 = vmatpush2.bf16.msra.mxu0 0
    %2302 = vmatprep.subr.bf16.mxu0 0
    %2303 = vmatpush2.bf16.msra.mxu0 0
    %2304 = vmatprep.subr.bf16.mxu0 0
    %2305 = vmatpush2.bf16.msra.mxu0 0
    %2306 = vmatprep.mubr.bf16.mxu0 0
    %2307 = vmatmul.mubr.bf16.gmra.mxu0 %v2268
    %v2308 = vpop.f32.mrf.mxu0
    %v2309 = vadd.f32 %v2243, %v2308
    %v2310 = vpop.f32.mrf.mxu0
    %v2311 = vpop.f32.mrf.mxu0
    %v2312 = vpop.f32.mrf.mxu0
    %2313 = vdwg.mxu0
    %vm2314 = vcmask 74752
    %2315 = vst.msk [vmem:[#allocation2] sm:$0x3] %vm2314, %v2309
    // Predicated region
    $region26: #{tpu_custom_call.1} parent=1 // pred_check
      _
    $region27: #{tpu_custom_call.1} parent=1 // pred_check_branch
      %2317 = sbr.rel (0) target = $region29
    $region28: #{tpu_custom_call.1} parent=1 // pred_region
      %s2319 = ssub.s32 32, 32
      %2320 = vsyncadd [#allocation3], %s2319
      %s2322 = sshll.u32 [#allocation2], 4
      %s2323 = int_to_ptr.vmem [resolvable:$true] %s2322
      %2325 = dma.vmem_to_hbm [thread:$0]  %s2323, 32, %s6, [#allocation3]
    $region29: #{tpu_custom_call.1} parent=1 // pred_fallthru
      _
    // Predicated region
    $region30: #{tpu_custom_call.1} parent=1 // pred_check
      _
    $region31: #{tpu_custom_call.1} parent=1 // pred_check_branch
      %2327 = sbr.rel (0) target = $region33
    $region32: #{tpu_custom_call.1} parent=1 // pred_region
      %2328 = dma.done [#allocation3], 32
    $region33: #{tpu_custom_call.1} parent=1 // pred_fallthru
      _
    %2329 = vsyncpa [#allocation3], 1

</llo_original>
